<compile_context>
chip_gen: v6e
topology: v6e:2x2x1
jax: 0.10.0
libtpu: 0.0.40
codegen_flags: <defaults>
</compile_context>

<pallas_src>
import functools

import jax
import jax.numpy as jnp
from jax import lax
from jax.experimental import pallas as pl
from jax.experimental.pallas import tpu as pltpu


def _round_up(x, m):
    return (x + m - 1) // m * m


def _sigmoid_via_tanh(x):
    # sigmoid(x) == 0.5 * (tanh(x/2) + 1); tanh is a single EUP push while
    # sigmoid lowers to exp + reciprocal (2 pushes) on the serial critical path.
    return 0.5 * (jnp.tanh(0.5 * x) + 1.0)


# ----------------------------------------------------------------------------
# Kernel
# ----------------------------------------------------------------------------
def bilstm_kernel(x_ref, wih_ref, whh_ref, b_ref, wout_ref, bout_ref,
                  out_ref, h_ref, c_ref, gproj_ref, *, chunk, rem, unroll):
    """One grid step = `chunk` combined time steps of BOTH directions.

    Layouts (G = round_up(2H, 128); gate-major, directions packed per gate):
      x_ref     (chunk*Bp, 2E)  rows = [t0 b0..bBp-1, t1 ...]; cols [x_fwd | x_bwd_rev]
      wih_ref   (2E, 4G)        per gate columns: [fwd(H) | bwd(H) | pad]
      whh_ref   (G, 4G)         per gate/direction "block diagonal"
      h/c_ref   (Bp, G)         packed carries [h_fwd | h_bwd | pad]  (f32)
      gproj_ref (chunk*Bp, 4G)  hoisted x-projections with fused bias (f32)
    """
    t = pl.program_id(0)
    n_chunks = pl.num_programs(0)
    Bp, G = h_ref.shape

    @pl.when(t == 0)
    def _init():
        h_ref[...] = jnp.zeros_like(h_ref)
        c_ref[...] = jnp.zeros_like(c_ref)

    # Hoisted input projection: ONE MXU matmul per chunk covers both directions
    # and all four gates; parked in VMEM with a single contiguous store.
    gproj_ref[...] = (jnp.dot(x_ref[...], wih_ref[...],
                              preferred_element_type=jnp.float32) + b_ref[...])

    whh = whh_ref[...]
    mm_dtype = whh.dtype

    def step(s, carry):
        h, c = carry                                            # f32 (Bp, G)
        row0 = pl.multiple_of(s * Bp, Bp)                       # aligned dyn slice
        gates = (gproj_ref[pl.ds(row0, Bp), :]
                 + jnp.dot(h.astype(mm_dtype), whh,
                           preferred_element_type=jnp.float32))  # (Bp, 4G) f32
        i = _sigmoid_via_tanh(gates[:, 0 * G:1 * G])
        f = _sigmoid_via_tanh(gates[:, 1 * G:2 * G])
        g = jnp.tanh(gates[:, 2 * G:3 * G])
        o = _sigmoid_via_tanh(gates[:, 3 * G:4 * G])
        c = f * c + i * g
        h = o * jnp.tanh(c)
        return h, c

    def run_steps(n_steps):
        h, c = lax.fori_loop(0, n_steps, step, (h_ref[...], c_ref[...]),
                             unroll=max(1, min(n_steps, unroll)))
        h_ref[...] = h
        c_ref[...] = c
        return h

    def finalize(h):
        wout = wout_ref[...]
        out_ref[...] = (jnp.dot(h.astype(wout.dtype), wout,
                                preferred_element_type=jnp.float32)
                        + bout_ref[...])

    if rem == chunk:
        # T divides evenly into chunks: one unconditional loop per grid step.
        h = run_steps(chunk)

        @pl.when(t == n_chunks - 1)
        def _fin():
            finalize(h)
    else:
        # Static remainder chunk: last grid step runs only `rem` valid steps
        # (the trailing padded time steps of the last chunk are never consumed).
        @pl.when(t < n_chunks - 1)
        def _mid():
            run_steps(chunk)

        @pl.when(t == n_chunks - 1)
        def _last():
            finalize(run_steps(rem))


# ----------------------------------------------------------------------------
# Parameter preparation (gate-major, direction-packed, 128-lane-padded layout)
# ----------------------------------------------------------------------------
def prepare_kernel_params(raw, emb_dim, hid_dim, n_tags,
                          compute_dtype=jnp.bfloat16):
    H, E = hid_dim, emb_dim
    G = _round_up(2 * H, 128)          # one lane group per gate: [fwd(H)|bwd(H)|pad]
    ntp = _round_up(n_tags, 128)

    wih_f = raw["w_ih_f"].T            # (E, 4H), PyTorch gate order i, f, g, o
    wih_b = raw["w_ih_b"].T
    whh_f = raw["w_hh_f"].T            # (H, 4H)
    whh_b = raw["w_hh_b"].T
    b_f = raw["b_ih_f"] + raw["b_hh_f"]
    b_b = raw["b_ih_b"] + raw["b_hh_b"]

    wih = jnp.zeros((2 * E, 4 * G), jnp.float32)
    whh = jnp.zeros((G, 4 * G), jnp.float32)
    bias = jnp.zeros((4 * G,), jnp.float32)
    for g in range(4):                 # gates i, f, g, o
        src = slice(g * H, (g + 1) * H)
        fc = slice(g * G, g * G + H)            # fwd columns of this gate group
        bc = slice(g * G + H, g * G + 2 * H)    # bwd columns of this gate group
        wih = wih.at[:E, fc].set(wih_f[:, src]).at[E:, bc].set(wih_b[:, src])
        whh = whh.at[:H, fc].set(whh_f[:, src]).at[H:2 * H, bc].set(whh_b[:, src])
        bias = bias.at[fc].set(b_f[src]).at[bc].set(b_b[src])

    wlin = raw["w_lin"].T                                        # (2H, n_tags)
    wout = jnp.zeros((G, ntp), jnp.float32).at[:2 * H, :n_tags].set(wlin)
    bout = jnp.zeros((1, ntp), jnp.float32).at[0, :n_tags].set(raw["b_lin"])

    return {
        "wih": wih.astype(compute_dtype),
        "whh": whh.astype(compute_dtype),
        "b": bias[None, :],             # f32 (added to f32 gate accumulators)
        "wout": wout.astype(compute_dtype),
        "bout": bout,                   # f32
        "G": G, "ntp": ntp, "n_tags": n_tags, "H": H,
    }


# ----------------------------------------------------------------------------
# Wrapper
# ----------------------------------------------------------------------------
def _vmem_cap_bytes(default_bytes=64 << 20):
    try:
        return int(pltpu.get_tpu_info().vmem_capacity_bytes)
    except Exception:
        return default_bytes


def bilstm_forward(inp, embedding, kp, *, time_chunk=32, unroll=4):
    """inp: int32 token ids (B, T). Returns (logits (B, n_tags), attn (B, T))."""
    B, T = inp.shape
    E = embedding.shape[1]
    G, ntp, n_tags = kp["G"], kp["ntp"], kp["n_tags"]
    compute_dtype = kp["wih"].dtype

    # NOTE: production batches should be padded/stacked toward 128-256 rows for
    # MXU fill; the toy test uses the minimum 8-sublane padding.
    Bp = _round_up(B, 8)
    tT = max(1, min(time_chunk, T))
    nT = pl.cdiv(T, tT)
    rem = T - (nT - 1) * tT                     # static remainder chunk (1..tT)
    Tp = nT * tT

    # Embedding gather + fwd/bwd pairing in plain JAX (layout glue, done once).
    emb = embedding[inp]                                     # (B, T, E) f32
    x = jnp.transpose(emb, (1, 0, 2))                        # time-major (T, B, E)
    if Bp != B:
        x = jnp.pad(x, ((0, 0), (0, Bp - B), (0, 0)))
    # Combined step s feeds x[s] to the fwd chain and x[T-1-s] to the bwd chain.
    x_pair = jnp.concatenate([x, x[::-1]], axis=-1)          # (T, Bp, 2E)
    if Tp != T:
        x_pair = jnp.pad(x_pair, ((0, Tp - T), (0, 0), (0, 0)))  # never consumed
    x_pair = x_pair.reshape(Tp * Bp, 2 * E).astype(compute_dtype)

    def full_spec(a):
        nd = a.ndim
        return pl.BlockSpec(a.shape, lambda t, _nd=nd: (0,) * _nd)

    grid_spec = pltpu.PrefetchScalarGridSpec(
        num_scalar_prefetch=0,
        grid=(nT,),
        in_specs=[
            pl.BlockSpec((tT * Bp, 2 * E), lambda t: (t, 0)),    # paired x chunks
            full_spec(kp["wih"]),
            full_spec(kp["whh"]),
            full_spec(kp["b"]),
            full_spec(kp["wout"]),
            full_spec(kp["bout"]),
        ],
        out_specs=pl.BlockSpec((Bp, ntp), lambda t: (0, 0)),
        scratch_shapes=[
            pltpu.VMEM((Bp, G), jnp.float32),                    # h carry [fwd|bwd]
            pltpu.VMEM((Bp, G), jnp.float32),                    # c carry [fwd|bwd]
            pltpu.VMEM((tT * Bp, 4 * G), jnp.float32),           # chunk gate proj
        ],
    )

    # Derive the VMEM budget from the actual buffers (x chunk and weights counted
    # double-buffered), clamped to [32 MiB, 0.75 * chip VMEM capacity].
    itemsize = jnp.dtype(compute_dtype).itemsize
    need = (2 * tT * Bp * 2 * E * itemsize
            + 2 * sum(int(kp[k].size) * jnp.dtype(kp[k].dtype).itemsize
                      for k in ("wih", "whh", "b", "wout", "bout"))
            + (2 * Bp * G + tT * Bp * 4 * G) * 4
            + 2 * Bp * ntp * 4)
    vmem_limit = int(min(int(0.75 * _vmem_cap_bytes()),
                         max(32 << 20, 2 * need)))

    kernel = functools.partial(bilstm_kernel, chunk=tT, rem=rem, unroll=unroll)
    out_padded = pl.pallas_call(
        kernel,
        out_shape=jax.ShapeDtypeStruct((Bp, ntp), jnp.float32),
        grid_spec=grid_spec,
        compiler_params=pltpu.CompilerParams(
            dimension_semantics=("arbitrary",),      # serial recurrence over time
            vmem_limit_bytes=vmem_limit,
        ),
    )(x_pair, kp["wih"], kp["whh"], kp["b"], kp["wout"], kp["bout"])

    out = out_padded[:B, :n_tags]
    attn = jnp.full((B, T), 1.0 / T, dtype=jnp.float32)      # constant; wrapper-side
    return out, attn


# ----------------------------------------------------------------------------
# Raw (PyTorch-layout) params + pure-JAX f32 reference
# ----------------------------------------------------------------------------
def make_raw_params(key, n_words, emb_dim, hid_dim, n_tags, scale=0.1):
    ks = jax.random.split(key, 11)
    H = hid_dim

    def rnd(k, shape):
        return jax.random.normal(k, shape, dtype=jnp.float32) * scale

    return {
        "embedding": rnd(ks[0], (n_words, emb_dim)),
        "w_ih_f": rnd(ks[1], (4 * H, emb_dim)),
        "w_hh_f": rnd(ks[2], (4 * H, H)),
        "b_ih_f": rnd(ks[3], (4 * H,)),
        "b_hh_f": rnd(ks[4], (4 * H,)),
        "w_ih_b": rnd(ks[5], (4 * H, emb_dim)),
        "w_hh_b": rnd(ks[6], (4 * H, H)),
        "b_ih_b": rnd(ks[7], (4 * H,)),
        "b_hh_b": rnd(ks[8], (4 * H,)),
        "w_lin": rnd(ks[9], (n_tags, 2 * H)),
        "b_lin": rnd(ks[10], (n_tags,)),
    }


def reference_forward(inp, raw):
    """Pure-JAX f32 reference of the PyTorch forward (for correctness checks)."""
    hi = jax.lax.Precision.HIGHEST
    emb = raw["embedding"][inp].astype(jnp.float32)          # (B, T, E)
    B, T, _ = emb.shape
    H = raw["w_hh_f"].shape[1]

    def run(x_seq, w_ih, w_hh, b):
        wih, whh = w_ih.T, w_hh.T

        def cell(carry, x_t):
            h, c = carry
            gates = (jnp.dot(x_t, wih, precision=hi)
                     + jnp.dot(h, whh, precision=hi) + b)
            i = jax.nn.sigmoid(gates[:, 0 * H:1 * H])
            f = jax.nn.sigmoid(gates[:, 1 * H:2 * H])
            g = jnp.tanh(gates[:, 2 * H:3 * H])
            o = jax.nn.sigmoid(gates[:, 3 * H:4 * H])
            c = f * c + i * g
            h = o * jnp.tanh(c)
            return (h, c), None

        z = jnp.zeros((B, H), jnp.float32)
        (h, _), _ = lax.scan(cell, (z, z), x_seq)
        return h

    xs = jnp.swapaxes(emb, 0, 1)                             # (T, B, E)
    hf = run(xs, raw["w_ih_f"], raw["w_hh_f"], raw["b_ih_f"] + raw["b_hh_f"])
    hb = run(xs[::-1], raw["w_ih_b"], raw["w_hh_b"], raw["b_ih_b"] + raw["b_hh_b"])
    last = jnp.concatenate([hf, hb], axis=-1)
    out = jnp.dot(last, raw["w_lin"].T, precision=hi) + raw["b_lin"]
    attn = jnp.full((B, T), 1.0 / T, jnp.float32)
    return out, attn


# ----------------------------------------------------------------------------
if __name__ == "__main__":
    key = jax.random.PRNGKey(0)
    n_words, emb_dim, hid_dim, n_tags = 50, 16, 32, 5
    B, T = 2, 8

    pkey, ikey = jax.random.split(key)
    raw = make_raw_params(pkey, n_words, emb_dim, hid_dim, n_tags)
    inp = jax.random.randint(ikey, (B, T), 0, n_words, dtype=jnp.int32)

    ref_out, ref_attn = reference_forward(inp, raw)

    # f32 kernel, chunk divides T: tight check of layout / recurrence / grid.
    kp32 = prepare_kernel_params(raw, emb_dim, hid_dim, n_tags, jnp.float32)
    run32 = jax.jit(lambda tok: bilstm_forward(tok, raw["embedding"], kp32,
                                               time_chunk=4))
    out32, attn32 = jax.block_until_ready(run32(inp))
    assert out32.shape == (B, n_tags) and attn32.shape == (B, T)
    assert jnp.allclose(out32, ref_out, atol=1e-4, rtol=1e-4)
    assert jnp.allclose(attn32, ref_attn)

    # f32 kernel, chunk does NOT divide T: exercises the static remainder chunk.
    run32r = jax.jit(lambda tok: bilstm_forward(tok, raw["embedding"], kp32,
                                                time_chunk=5))
    out32r, _ = jax.block_until_ready(run32r(inp))
    assert jnp.allclose(out32r, ref_out, atol=1e-4, rtol=1e-4)

    # bf16 fast path (v6e/v7x): bf16 weights/activations, f32 carries/accum.
    kp16 = prepare_kernel_params(raw, emb_dim, hid_dim, n_tags, jnp.bfloat16)
    run16 = jax.jit(lambda tok: bilstm_forward(tok, raw["embedding"], kp16,
                                               time_chunk=32))
    out16, attn16 = jax.block_until_ready(run16(inp))
    assert out16.shape == (B, n_tags) and attn16.shape == (B, T)
    assert jnp.allclose(out16, ref_out, atol=5e-3, rtol=5e-3)
    assert jnp.allclose(attn16, ref_attn)

    print("KERNEL_OK")
</pallas_src>

<mosaic_0001>
module attributes {stable_mosaic.version = 11 : i64} {
  func.func @bilstm_kernel(%arg0: i32, %arg1: memref<32x32xf32, #tpu.memory_space<vmem>>, %arg2: memref<32x512xf32, #tpu.memory_space<vmem>>, %arg3: memref<128x512xf32, #tpu.memory_space<vmem>>, %arg4: memref<1x512xf32, #tpu.memory_space<vmem>>, %arg5: memref<128x128xf32, #tpu.memory_space<vmem>>, %arg6: memref<1x128xf32, #tpu.memory_space<vmem>>, %arg7: memref<8x128xf32, #tpu.memory_space<vmem>>, %arg8: memref<8x128xf32, #tpu.memory_space<vmem>>, %arg9: memref<8x128xf32, #tpu.memory_space<vmem>>, %arg10: memref<32x512xf32, #tpu.memory_space<vmem>>) attributes {dimension_semantics = [#tpu.dimension_semantics<arbitrary>], iteration_bounds = array<i64: 2>, scalar_prefetch = 0 : i64, scratch_operands = 3 : i64, tpu.core_type = #tpu.core_type<tc>, window_params = [{transform_indices = @transform_0, window_bounds = array<i64: 32, 32>}, {pipeline_mode = #tpu.pipeline_mode<synchronous>, transform_indices = @transform_1, window_bounds = array<i64: 32, 512>}, {pipeline_mode = #tpu.pipeline_mode<synchronous>, transform_indices = @transform_2, window_bounds = array<i64: 128, 512>}, {pipeline_mode = #tpu.pipeline_mode<synchronous>, transform_indices = @transform_3, window_bounds = array<i64: 1, 512>}, {pipeline_mode = #tpu.pipeline_mode<synchronous>, transform_indices = @transform_4, window_bounds = array<i64: 128, 128>}, {pipeline_mode = #tpu.pipeline_mode<synchronous>, transform_indices = @transform_5, window_bounds = array<i64: 1, 128>}, {pipeline_mode = #tpu.pipeline_mode<synchronous>, transform_indices = @transform_6, window_bounds = array<i64: 8, 128>}]} {
    %c0_i32 = arith.constant 0 : i32
    %0 = arith.cmpi eq, %arg0, %c0_i32 : i32
    %1 = arith.extui %0 : i1 to i32
    %c0_i32_0 = arith.constant 0 : i32
    %2 = arith.cmpi ne, %1, %c0_i32_0 : i32
    scf.if %2 {
      %cst_68 = arith.constant 0.000000e+00 : f32
      %166 = vector.broadcast %cst_68 : f32 to vector<8x128xf32>
      %c0_69 = arith.constant 0 : index
      %c0_70 = arith.constant 0 : index
      %167 = vector.load %arg8[%c0_69, %c0_70] : memref<8x128xf32, #tpu.memory_space<vmem>>, vector<8x128xf32>
      tpu.vector_store %arg8[%c0_69, %c0_70], %166 {strides = array<i32>} : memref<8x128xf32, #tpu.memory_space<vmem>>, vector<8x128xf32>,
      %cst_71 = arith.constant 0.000000e+00 : f32
      %168 = vector.broadcast %cst_71 : f32 to vector<8x128xf32>
      %c0_72 = arith.constant 0 : index
      %c0_73 = arith.constant 0 : index
      %169 = vector.load %arg9[%c0_72, %c0_73] : memref<8x128xf32, #tpu.memory_space<vmem>>, vector<8x128xf32>
      tpu.vector_store %arg9[%c0_72, %c0_73], %168 {strides = array<i32>} : memref<8x128xf32, #tpu.memory_space<vmem>>, vector<8x128xf32>,
    } else {
    }
    %c0 = arith.constant 0 : index
    %c0_1 = arith.constant 0 : index
    %3 = vector.load %arg1[%c0, %c0_1] : memref<32x32xf32, #tpu.memory_space<vmem>>, vector<32x32xf32>
    %c0_2 = arith.constant 0 : index
    %c0_3 = arith.constant 0 : index
    %4 = vector.load %arg2[%c0_2, %c0_3] : memref<32x512xf32, #tpu.memory_space<vmem>>, vector<32x512xf32>
    %cst = arith.constant dense<0.000000e+00> : vector<32x512xf32>
    %5 = tpu.matmul %3, %4, %cst {dimension_numbers = #tpu.dot_dimension_numbers<[1], [0], [0], [1], [0, 0, 1, 1], [], []>} : vector<32x32xf32>, vector<32x512xf32>, vector<32x512xf32> -> vector<32x512xf32>
    %c0_4 = arith.constant 0 : index
    %c0_5 = arith.constant 0 : index
    %6 = vector.load %arg4[%c0_4, %c0_5] : memref<1x512xf32, #tpu.memory_space<vmem>>, vector<1x512xf32>
    %7 = vector.broadcast %6 : vector<1x512xf32> to vector<32x512xf32>
    %8 = arith.addf %5, %7 : vector<32x512xf32>
    %c0_6 = arith.constant 0 : index
    %c0_7 = arith.constant 0 : index
    %9 = vector.load %arg10[%c0_6, %c0_7] : memref<32x512xf32, #tpu.memory_space<vmem>>, vector<32x512xf32>
    tpu.vector_store %arg10[%c0_6, %c0_7], %8 {strides = array<i32>} : memref<32x512xf32, #tpu.memory_space<vmem>>, vector<32x512xf32>,
    %c0_8 = arith.constant 0 : index
    %c0_9 = arith.constant 0 : index
    %10 = vector.load %arg3[%c0_8, %c0_9] : memref<128x512xf32, #tpu.memory_space<vmem>>, vector<128x512xf32>
    %c0_10 = arith.constant 0 : index
    %c0_11 = arith.constant 0 : index
    %11 = vector.load %arg8[%c0_10, %c0_11] : memref<8x128xf32, #tpu.memory_space<vmem>>, vector<8x128xf32>
    %c0_12 = arith.constant 0 : index
    %c0_13 = arith.constant 0 : index
    %12 = vector.load %arg9[%c0_12, %c0_13] : memref<8x128xf32, #tpu.memory_space<vmem>>, vector<8x128xf32>
    %c0_i32_14 = arith.constant 0 : i32
    %c8_i32 = arith.constant 8 : i32
    %13 = arith.muli %c0_i32_14, %c8_i32 : i32
    %14 = tpu.assume_multiple %13, 8 : i32
    %15 = arith.index_cast %14 : i32 to index
    %c0_15 = arith.constant 0 : index
    %16 = vector.load %arg10[%15, %c0_15] : memref<32x512xf32, #tpu.memory_space<vmem>>, vector<8x512xf32>
    %cst_16 = arith.constant dense<0.000000e+00> : vector<8x512xf32>
    %17 = tpu.matmul %11, %10, %cst_16 {dimension_numbers = #tpu.dot_dimension_numbers<[1], [0], [0], [1], [0, 0, 1, 1], [], []>} : vector<8x128xf32>, vector<128x512xf32>, vector<8x512xf32> -> vector<8x512xf32>
    %18 = arith.addf %16, %17 : vector<8x512xf32>
    %19 = vector.extract_strided_slice %18 {offsets = [0, 0], sizes = [8, 128], strides = [1, 1]} : vector<8x512xf32> to vector<8x128xf32>
    %cst_17 = arith.constant 5.000000e-01 : f32
    %20 = vector.broadcast %cst_17 : f32 to vector<8x128xf32>
    %21 = arith.mulf %20, %19 : vector<8x128xf32>
    %22 = math.tanh %21 : vector<8x128xf32>
    %cst_18 = arith.constant 1.000000e+00 : f32
    %23 = vector.broadcast %cst_18 : f32 to vector<8x128xf32>
    %24 = arith.addf %22, %23 : vector<8x128xf32>
    %cst_19 = arith.constant 5.000000e-01 : f32
    %25 = vector.broadcast %cst_19 : f32 to vector<8x128xf32>
    %26 = arith.mulf %25, %24 : vector<8x128xf32>
    %27 = vector.extract_strided_slice %18 {offsets = [0, 128], sizes = [8, 128], strides = [1, 1]} : vector<8x512xf32> to vector<8x128xf32>
    %cst_20 = arith.constant 5.000000e-01 : f32
    %28 = vector.broadcast %cst_20 : f32 to vector<8x128xf32>
    %29 = arith.mulf %28, %27 : vector<8x128xf32>
    %30 = math.tanh %29 : vector<8x128xf32>
    %cst_21 = arith.constant 1.000000e+00 : f32
    %31 = vector.broadcast %cst_21 : f32 to vector<8x128xf32>
    %32 = arith.addf %30, %31 : vector<8x128xf32>
    %cst_22 = arith.constant 5.000000e-01 : f32
    %33 = vector.broadcast %cst_22 : f32 to vector<8x128xf32>
    %34 = arith.mulf %33, %32 : vector<8x128xf32>
    %35 = vector.extract_strided_slice %18 {offsets = [0, 256], sizes = [8, 128], strides = [1, 1]} : vector<8x512xf32> to vector<8x128xf32>
    %36 = math.tanh %35 : vector<8x128xf32>
    %37 = vector.extract_strided_slice %18 {offsets = [0, 384], sizes = [8, 128], strides = [1, 1]} : vector<8x512xf32> to vector<8x128xf32>
    %cst_23 = arith.constant 5.000000e-01 : f32
    %38 = vector.broadcast %cst_23 : f32 to vector<8x128xf32>
    %39 = arith.mulf %38, %37 : vector<8x128xf32>
    %40 = math.tanh %39 : vector<8x128xf32>
    %cst_24 = arith.constant 1.000000e+00 : f32
    %41 = vector.broadcast %cst_24 : f32 to vector<8x128xf32>
    %42 = arith.addf %40, %41 : vector<8x128xf32>
    %cst_25 = arith.constant 5.000000e-01 : f32
    %43 = vector.broadcast %cst_25 : f32 to vector<8x128xf32>
    %44 = arith.mulf %43, %42 : vector<8x128xf32>
    %45 = arith.mulf %34, %12 : vector<8x128xf32>
    %46 = arith.mulf %26, %36 : vector<8x128xf32>
    %47 = arith.addf %45, %46 : vector<8x128xf32>
    %48 = math.tanh %47 : vector<8x128xf32>
    %49 = arith.mulf %44, %48 : vector<8x128xf32>
    %c1_i32 = arith.constant 1 : i32
    %c8_i32_26 = arith.constant 8 : i32
    %50 = arith.muli %c1_i32, %c8_i32_26 : i32
    %51 = tpu.assume_multiple %50, 8 : i32
    %52 = arith.index_cast %51 : i32 to index
    %c0_27 = arith.constant 0 : index
    %53 = vector.load %arg10[%52, %c0_27] : memref<32x512xf32, #tpu.memory_space<vmem>>, vector<8x512xf32>
    %cst_28 = arith.constant dense<0.000000e+00> : vector<8x512xf32>
    %54 = tpu.matmul %49, %10, %cst_28 {dimension_numbers = #tpu.dot_dimension_numbers<[1], [0], [0], [1], [0, 0, 1, 1], [], []>} : vector<8x128xf32>, vector<128x512xf32>, vector<8x512xf32> -> vector<8x512xf32>
    %55 = arith.addf %53, %54 : vector<8x512xf32>
    %56 = vector.extract_strided_slice %55 {offsets = [0, 0], sizes = [8, 128], strides = [1, 1]} : vector<8x512xf32> to vector<8x128xf32>
    %cst_29 = arith.constant 5.000000e-01 : f32
    %57 = vector.broadcast %cst_29 : f32 to vector<8x128xf32>
    %58 = arith.mulf %57, %56 : vector<8x128xf32>
    %59 = math.tanh %58 : vector<8x128xf32>
    %cst_30 = arith.constant 1.000000e+00 : f32
    %60 = vector.broadcast %cst_30 : f32 to vector<8x128xf32>
    %61 = arith.addf %59, %60 : vector<8x128xf32>
    %cst_31 = arith.constant 5.000000e-01 : f32
    %62 = vector.broadcast %cst_31 : f32 to vector<8x128xf32>
    %63 = arith.mulf %62, %61 : vector<8x128xf32>
    %64 = vector.extract_strided_slice %55 {offsets = [0, 128], sizes = [8, 128], strides = [1, 1]} : vector<8x512xf32> to vector<8x128xf32>
    %cst_32 = arith.constant 5.000000e-01 : f32
    %65 = vector.broadcast %cst_32 : f32 to vector<8x128xf32>
    %66 = arith.mulf %65, %64 : vector<8x128xf32>
    %67 = math.tanh %66 : vector<8x128xf32>
    %cst_33 = arith.constant 1.000000e+00 : f32
    %68 = vector.broadcast %cst_33 : f32 to vector<8x128xf32>
    %69 = arith.addf %67, %68 : vector<8x128xf32>
    %cst_34 = arith.constant 5.000000e-01 : f32
    %70 = vector.broadcast %cst_34 : f32 to vector<8x128xf32>
    %71 = arith.mulf %70, %69 : vector<8x128xf32>
    %72 = vector.extract_strided_slice %55 {offsets = [0, 256], sizes = [8, 128], strides = [1, 1]} : vector<8x512xf32> to vector<8x128xf32>
    %73 = math.tanh %72 : vector<8x128xf32>
    %74 = vector.extract_strided_slice %55 {offsets = [0, 384], sizes = [8, 128], strides = [1, 1]} : vector<8x512xf32> to vector<8x128xf32>
    %cst_35 = arith.constant 5.000000e-01 : f32
    %75 = vector.broadcast %cst_35 : f32 to vector<8x128xf32>
    %76 = arith.mulf %75, %74 : vector<8x128xf32>
    %77 = math.tanh %76 : vector<8x128xf32>
    %cst_36 = arith.constant 1.000000e+00 : f32
    %78 = vector.broadcast %cst_36 : f32 to vector<8x128xf32>
    %79 = arith.addf %77, %78 : vector<8x128xf32>
    %cst_37 = arith.constant 5.000000e-01 : f32
    %80 = vector.broadcast %cst_37 : f32 to vector<8x128xf32>
    %81 = arith.mulf %80, %79 : vector<8x128xf32>
    %82 = arith.mulf %71, %47 : vector<8x128xf32>
    %83 = arith.mulf %63, %73 : vector<8x128xf32>
    %84 = arith.addf %82, %83 : vector<8x128xf32>
    %85 = math.tanh %84 : vector<8x128xf32>
    %86 = arith.mulf %81, %85 : vector<8x128xf32>
    %c2_i32 = arith.constant 2 : i32
    %c8_i32_38 = arith.constant 8 : i32
    %87 = arith.muli %c2_i32, %c8_i32_38 : i32
    %88 = tpu.assume_multiple %87, 8 : i32
    %89 = arith.index_cast %88 : i32 to index
    %c0_39 = arith.constant 0 : index
    %90 = vector.load %arg10[%89, %c0_39] : memref<32x512xf32, #tpu.memory_space<vmem>>, vector<8x512xf32>
    %cst_40 = arith.constant dense<0.000000e+00> : vector<8x512xf32>
    %91 = tpu.matmul %86, %10, %cst_40 {dimension_numbers = #tpu.dot_dimension_numbers<[1], [0], [0], [1], [0, 0, 1, 1], [], []>} : vector<8x128xf32>, vector<128x512xf32>, vector<8x512xf32> -> vector<8x512xf32>
    %92 = arith.addf %90, %91 : vector<8x512xf32>
    %93 = vector.extract_strided_slice %92 {offsets = [0, 0], sizes = [8, 128], strides = [1, 1]} : vector<8x512xf32> to vector<8x128xf32>
    %cst_41 = arith.constant 5.000000e-01 : f32
    %94 = vector.broadcast %cst_41 : f32 to vector<8x128xf32>
    %95 = arith.mulf %94, %93 : vector<8x128xf32>
    %96 = math.tanh %95 : vector<8x128xf32>
    %cst_42 = arith.constant 1.000000e+00 : f32
    %97 = vector.broadcast %cst_42 : f32 to vector<8x128xf32>
    %98 = arith.addf %96, %97 : vector<8x128xf32>
    %cst_43 = arith.constant 5.000000e-01 : f32
    %99 = vector.broadcast %cst_43 : f32 to vector<8x128xf32>
    %100 = arith.mulf %99, %98 : vector<8x128xf32>
    %101 = vector.extract_strided_slice %92 {offsets = [0, 128], sizes = [8, 128], strides = [1, 1]} : vector<8x512xf32> to vector<8x128xf32>
    %cst_44 = arith.constant 5.000000e-01 : f32
    %102 = vector.broadcast %cst_44 : f32 to vector<8x128xf32>
    %103 = arith.mulf %102, %101 : vector<8x128xf32>
    %104 = math.tanh %103 : vector<8x128xf32>
    %cst_45 = arith.constant 1.000000e+00 : f32
    %105 = vector.broadcast %cst_45 : f32 to vector<8x128xf32>
    %106 = arith.addf %104, %105 : vector<8x128xf32>
    %cst_46 = arith.constant 5.000000e-01 : f32
    %107 = vector.broadcast %cst_46 : f32 to vector<8x128xf32>
    %108 = arith.mulf %107, %106 : vector<8x128xf32>
    %109 = vector.extract_strided_slice %92 {offsets = [0, 256], sizes = [8, 128], strides = [1, 1]} : vector<8x512xf32> to vector<8x128xf32>
    %110 = math.tanh %109 : vector<8x128xf32>
    %111 = vector.extract_strided_slice %92 {offsets = [0, 384], sizes = [8, 128], strides = [1, 1]} : vector<8x512xf32> to vector<8x128xf32>
    %cst_47 = arith.constant 5.000000e-01 : f32
    %112 = vector.broadcast %cst_47 : f32 to vector<8x128xf32>
    %113 = arith.mulf %112, %111 : vector<8x128xf32>
    %114 = math.tanh %113 : vector<8x128xf32>
    %cst_48 = arith.constant 1.000000e+00 : f32
    %115 = vector.broadcast %cst_48 : f32 to vector<8x128xf32>
    %116 = arith.addf %114, %115 : vector<8x128xf32>
    %cst_49 = arith.constant 5.000000e-01 : f32
    %117 = vector.broadcast %cst_49 : f32 to vector<8x128xf32>
    %118 = arith.mulf %117, %116 : vector<8x128xf32>
    %119 = arith.mulf %108, %84 : vector<8x128xf32>
    %120 = arith.mulf %100, %110 : vector<8x128xf32>
    %121 = arith.addf %119, %120 : vector<8x128xf32>
    %122 = math.tanh %121 : vector<8x128xf32>
    %123 = arith.mulf %118, %122 : vector<8x128xf32>
    %c3_i32 = arith.constant 3 : i32
    %c8_i32_50 = arith.constant 8 : i32
    %124 = arith.muli %c3_i32, %c8_i32_50 : i32
    %125 = tpu.assume_multiple %124, 8 : i32
    %126 = arith.index_cast %125 : i32 to index
    %c0_51 = arith.constant 0 : index
    %127 = vector.load %arg10[%126, %c0_51] : memref<32x512xf32, #tpu.memory_space<vmem>>, vector<8x512xf32>
    %cst_52 = arith.constant dense<0.000000e+00> : vector<8x512xf32>
    %128 = tpu.matmul %123, %10, %cst_52 {dimension_numbers = #tpu.dot_dimension_numbers<[1], [0], [0], [1], [0, 0, 1, 1], [], []>} : vector<8x128xf32>, vector<128x512xf32>, vector<8x512xf32> -> vector<8x512xf32>
    %129 = arith.addf %127, %128 : vector<8x512xf32>
    %130 = vector.extract_strided_slice %129 {offsets = [0, 0], sizes = [8, 128], strides = [1, 1]} : vector<8x512xf32> to vector<8x128xf32>
    %cst_53 = arith.constant 5.000000e-01 : f32
    %131 = vector.broadcast %cst_53 : f32 to vector<8x128xf32>
    %132 = arith.mulf %131, %130 : vector<8x128xf32>
    %133 = math.tanh %132 : vector<8x128xf32>
    %cst_54 = arith.constant 1.000000e+00 : f32
    %134 = vector.broadcast %cst_54 : f32 to vector<8x128xf32>
    %135 = arith.addf %133, %134 : vector<8x128xf32>
    %cst_55 = arith.constant 5.000000e-01 : f32
    %136 = vector.broadcast %cst_55 : f32 to vector<8x128xf32>
    %137 = arith.mulf %136, %135 : vector<8x128xf32>
    %138 = vector.extract_strided_slice %129 {offsets = [0, 128], sizes = [8, 128], strides = [1, 1]} : vector<8x512xf32> to vector<8x128xf32>
    %cst_56 = arith.constant 5.000000e-01 : f32
    %139 = vector.broadcast %cst_56 : f32 to vector<8x128xf32>
    %140 = arith.mulf %139, %138 : vector<8x128xf32>
    %141 = math.tanh %140 : vector<8x128xf32>
    %cst_57 = arith.constant 1.000000e+00 : f32
    %142 = vector.broadcast %cst_57 : f32 to vector<8x128xf32>
    %143 = arith.addf %141, %142 : vector<8x128xf32>
    %cst_58 = arith.constant 5.000000e-01 : f32
    %144 = vector.broadcast %cst_58 : f32 to vector<8x128xf32>
    %145 = arith.mulf %144, %143 : vector<8x128xf32>
    %146 = vector.extract_strided_slice %129 {offsets = [0, 256], sizes = [8, 128], strides = [1, 1]} : vector<8x512xf32> to vector<8x128xf32>
    %147 = math.tanh %146 : vector<8x128xf32>
    %148 = vector.extract_strided_slice %129 {offsets = [0, 384], sizes = [8, 128], strides = [1, 1]} : vector<8x512xf32> to vector<8x128xf32>
    %cst_59 = arith.constant 5.000000e-01 : f32
    %149 = vector.broadcast %cst_59 : f32 to vector<8x128xf32>
    %150 = arith.mulf %149, %148 : vector<8x128xf32>
    %151 = math.tanh %150 : vector<8x128xf32>
    %cst_60 = arith.constant 1.000000e+00 : f32
    %152 = vector.broadcast %cst_60 : f32 to vector<8x128xf32>
    %153 = arith.addf %151, %152 : vector<8x128xf32>
    %cst_61 = arith.constant 5.000000e-01 : f32
    %154 = vector.broadcast %cst_61 : f32 to vector<8x128xf32>
    %155 = arith.mulf %154, %153 : vector<8x128xf32>
    %156 = arith.mulf %145, %121 : vector<8x128xf32>
    %157 = arith.mulf %137, %147 : vector<8x128xf32>
    %158 = arith.addf %156, %157 : vector<8x128xf32>
    %159 = math.tanh %158 : vector<8x128xf32>
    %160 = arith.mulf %155, %159 : vector<8x128xf32>
    %c4_i32 = arith.constant 4 : i32
    %c0_62 = arith.constant 0 : index
    %c0_63 = arith.constant 0 : index
    %161 = vector.load %arg8[%c0_62, %c0_63] : memref<8x128xf32, #tpu.memory_space<vmem>>, vector<8x128xf32>
    tpu.vector_store %arg8[%c0_62, %c0_63], %160 {strides = array<i32>} : memref<8x128xf32, #tpu.memory_space<vmem>>, vector<8x128xf32>,
    %c0_64 = arith.constant 0 : index
    %c0_65 = arith.constant 0 : index
    %162 = vector.load %arg9[%c0_64, %c0_65] : memref<8x128xf32, #tpu.memory_space<vmem>>, vector<8x128xf32>
    tpu.vector_store %arg9[%c0_64, %c0_65], %158 {strides = array<i32>} : memref<8x128xf32, #tpu.memory_space<vmem>>, vector<8x128xf32>,
    %c1_i32_66 = arith.constant 1 : i32
    %163 = arith.cmpi eq, %arg0, %c1_i32_66 : i32
    %164 = arith.extui %163 : i1 to i32
    %c0_i32_67 = arith.constant 0 : i32
    %165 = arith.cmpi ne, %164, %c0_i32_67 : i32
    scf.if %165 {
      %c0_68 = arith.constant 0 : index
      %c0_69 = arith.constant 0 : index
      %166 = vector.load %arg5[%c0_68, %c0_69] : memref<128x128xf32, #tpu.memory_space<vmem>>, vector<128x128xf32>
      %cst_70 = arith.constant dense<0.000000e+00> : vector<8x128xf32>
      %167 = tpu.matmul %160, %166, %cst_70 {dimension_numbers = #tpu.dot_dimension_numbers<[1], [0], [0], [1], [0, 0, 1, 1], [], []>} : vector<8x128xf32>, vector<128x128xf32>, vector<8x128xf32> -> vector<8x128xf32>
      %c0_71 = arith.constant 0 : index
      %c0_72 = arith.constant 0 : index
      %168 = vector.load %arg6[%c0_71, %c0_72] : memref<1x128xf32, #tpu.memory_space<vmem>>, vector<1x128xf32>
      %169 = vector.broadcast %168 : vector<1x128xf32> to vector<8x128xf32>
      %170 = arith.addf %167, %169 : vector<8x128xf32>
      %c0_73 = arith.constant 0 : index
      %c0_74 = arith.constant 0 : index
      %171 = vector.load %arg7[%c0_73, %c0_74] : memref<8x128xf32, #tpu.memory_space<vmem>>, vector<8x128xf32>
      tpu.vector_store %arg7[%c0_73, %c0_74], %170 {strides = array<i32>} : memref<8x128xf32, #tpu.memory_space<vmem>>, vector<8x128xf32>,
    } else {
    }
    return
  }
  func.func @transform_0(%arg0: i32) -> (i32, i32) {
    %c0_i32 = arith.constant 0 : i32
    %c0_i32_0 = arith.constant 0 : i32
    return %arg0, %c0_i32 : i32, i32
  }
  func.func @transform_1(%arg0: i32) -> (i32, i32) {
    %c0_i32 = arith.constant 0 : i32
    %c0_i32_0 = arith.constant 0 : i32
    %c0_i32_1 = arith.constant 0 : i32
    return %c0_i32, %c0_i32_0 : i32, i32
  }
  func.func @transform_2(%arg0: i32) -> (i32, i32) {
    %c0_i32 = arith.constant 0 : i32
    %c0_i32_0 = arith.constant 0 : i32
    %c0_i32_1 = arith.constant 0 : i32
    return %c0_i32, %c0_i32_0 : i32, i32
  }
  func.func @transform_3(%arg0: i32) -> (i32, i32) {
    %c0_i32 = arith.constant 0 : i32
    %c0_i32_0 = arith.constant 0 : i32
    %c0_i32_1 = arith.constant 0 : i32
    return %c0_i32, %c0_i32_0 : i32, i32
  }
  func.func @transform_4(%arg0: i32) -> (i32, i32) {
    %c0_i32 = arith.constant 0 : i32
    %c0_i32_0 = arith.constant 0 : i32
    %c0_i32_1 = arith.constant 0 : i32
    return %c0_i32, %c0_i32_0 : i32, i32
  }
  func.func @transform_5(%arg0: i32) -> (i32, i32) {
    %c0_i32 = arith.constant 0 : i32
    %c0_i32_0 = arith.constant 0 : i32
    %c0_i32_1 = arith.constant 0 : i32
    return %c0_i32, %c0_i32_0 : i32, i32
  }
  func.func @transform_6(%arg0: i32) -> (i32, i32) {
    %c0_i32 = arith.constant 0 : i32
    %c0_i32_0 = arith.constant 0 : i32
    %c0_i32_1 = arith.constant 0 : i32
    return %c0_i32, %c0_i32_0 : i32, i32
  }
}

</mosaic_0001>

<llo_original>
// kernel: _lambda_.1
$region0: #{_lambda_.1}
  #allocation0 [shape = 'u32[]', space=smem, size = 0x4, offset = 0x4, fixed_abs, tag = 'smem constant byte address 0x4 - core index']
  #allocation1 [shape = 'u32[144,128]{1,0:T(1,128)}', space=vmem, size = 0x12000, scoped, tag = 'internal scratch']
  #allocation2 [shape = 'f32[8,128]{1,0:T(8,128)}', space=vmem, size = 0x1000, scoped, tag = 'scratch operand']
  #allocation3 [shape = 'f32[8,128]{1,0:T(8,128)}', space=vmem, size = 0x1000, scoped, tag = 'scratch operand']
  #allocation4 [shape = 'f32[32,512]{1,0:T(8,128)}', space=vmem, size = 0x10000, scoped, tag = 'scratch operand']
  %s0 = inlined_call_operand.vmem [shape: f32[64,32], index: 0, kind: input, shape index: {}]
  %s1 = inlined_call_operand.hbm [shape: f32[32,512], index: 1, kind: input, shape index: {}]
  %s2 = inlined_call_operand.vmem [shape: f32[128,512], index: 2, kind: input, shape index: {}]
  %s3 = inlined_call_operand.vmem [shape: f32[1,512], index: 3, kind: input, shape index: {}]
  %s4 = inlined_call_operand.hbm [shape: f32[128,128], index: 4, kind: input, shape index: {}]
  %s5 = inlined_call_operand.vmem [shape: f32[1,128], index: 5, kind: input, shape index: {}]
  %s6 = inlined_call_operand.vmem [shape: f32[8,128], index: 6, kind: output, shape index: {}]
  %s7 = sld [smem:[#allocation0]]
  $region73: #{_lambda_.1} parent=0
    _
  %s9 = ssub.s32 1, %s7
  %s10 = scalar_select 0, %s9, %s7
  $region1: #{_lambda_.1} parent=0
    #allocation5 [shape = 'u8[65536]{0}', space=vmem, size = 0x10000, scoped, tag = 'input window, operand 1, single buffered']
    #allocation6 [shape = 's32[2]{0}', space=sflag, size = 0x8, scoped, tag = 'scoped memory for _lambda_.1']
    #allocation7 [shape = 'u8[65536]{0}', space=vmem, size = 0x10000, scoped, tag = 'input window, operand 4, single buffered']
    #allocation8 [shape = 's32[1]{0}', space=sflag, size = 0x4, scoped, tag = 'scoped memory for _lambda_.1']
    %11 = vsyncpa [#allocation6], 0
    %12 = vsyncpa [#allocation8], 0
    loop: start=0, step=1, limit=4
    $region2: #{_lambda_.1} parent=1 // loop_pre_header
      _
    $region3: #{_lambda_.1} parent=1 // loop_header
      %s14 = sphi 0, %s18
      %p15 = scmp.ge.s32.totalorder %s14, 4
      %s24 = sphi 0, %s26
      %s27 = sphi 0, %s24
      %s28 = sphi 0, %s27
      %s44 = sphi 0, %s28
      %s48 = sphi 0, %s48
      %s50 = sphi 0, %s48
      %s51 = sphi 0, %s50
      %s65 = sphi 0, %s51
      %s69 = sphi 0, %s69
      %s71 = sphi 0, %s69
      %s72 = sphi 0, %s71
      %s86 = sphi 0, %s72
      %s90 = sphi 0, %s90
      %s92 = sphi 0, %s90
      %s93 = sphi 0, %s92
      %s107 = sphi 0, %s93
      %s111 = sphi 0, %s111
      %s113 = sphi 0, %s111
      %s114 = sphi 0, %s113
      %s128 = sphi 0, %s114
      %s132 = sphi 0, %s132
      %s134 = sphi 0, %s132
      %s135 = sphi 0, %s134
      %s149 = sphi 0, %s135
      %s153 = sphi 0, %s153
      %s155 = sphi 0, %s153
      %s156 = sphi 0, %s155
      %s170 = sphi 0, %s156
    $region4: #{_lambda_.1} parent=1 // loop_header_branch
      %17 = sbr.rel (%p15) target = $region8
    $region5: #{_lambda_.1} parent=1 // loop_body
      %s19 = ssub.s32 %s14, 1
      %s20 = ssub.s32 %s14, 2
      %s21 = sadd.s32 %s14, 1
      %s22 = ssub.s32 %s14, %s21
      %p23 = scmp.eq.s32.totalorder %s22, 0
      %s25 = sadd.s32 %s24, 1
      %s26 = scalar_select %p23, %s24, %s25
      %p29 = pneg %p23
      %p30 = scmp.eq.s32.totalorder %s14, 1
      %p31 = por %p29, %p30
      %p32 = scmp.ne.s32.totalorder %s24, %s27
      %p33 = scmp.eq.s32.totalorder %s14, 0
      %p34 = por %p32, %p33
      %p35 = scmp.ne.s32.totalorder %s24, %s27
      %p36 = scmp.eq.s32.totalorder %s19, 1
      %p37 = por %p35, %p36
      %p38 = scmp.ne.s32.totalorder %s27, %s28
      %p39 = scmp.eq.s32.totalorder %s19, 0
      %p40 = por %p38, %p39
      %p41 = scmp.ne.s32.totalorder %s27, %s28
      %p42 = scmp.eq.s32.totalorder %s20, 1
      %p43 = por %p41, %p42
      %p45 = scmp.ne.s32.totalorder %s28, %s44
      %p46 = scmp.eq.s32.totalorder %s20, 0
      %p47 = por %p45, %p46
      %s49 = sadd.s32 %s48, 1
      %p52 = scmp.eq.s32.totalorder %s14, 1
      %p53 = scmp.ne.s32.totalorder %s48, %s50
      %p54 = scmp.eq.s32.totalorder %s14, 0
      %p55 = por %p53, %p54
      %p56 = scmp.ne.s32.totalorder %s48, %s50
      %p57 = scmp.eq.s32.totalorder %s19, 1
      %p58 = por %p56, %p57
      %p59 = scmp.ne.s32.totalorder %s50, %s51
      %p60 = scmp.eq.s32.totalorder %s19, 0
      %p61 = por %p59, %p60
      %p62 = scmp.ne.s32.totalorder %s50, %s51
      %p63 = scmp.eq.s32.totalorder %s20, 1
      %p64 = por %p62, %p63
      %p66 = scmp.ne.s32.totalorder %s51, %s65
      %p67 = scmp.eq.s32.totalorder %s20, 0
      %p68 = por %p66, %p67
      %s70 = sadd.s32 %s69, 1
      %p73 = scmp.eq.s32.totalorder %s14, 1
      %p74 = scmp.ne.s32.totalorder %s69, %s71
      %p75 = scmp.eq.s32.totalorder %s14, 0
      %p76 = por %p74, %p75
      %p77 = scmp.ne.s32.totalorder %s69, %s71
      %p78 = scmp.eq.s32.totalorder %s19, 1
      %p79 = por %p77, %p78
      %p80 = scmp.ne.s32.totalorder %s71, %s72
      %p81 = scmp.eq.s32.totalorder %s19, 0
      %p82 = por %p80, %p81
      %p83 = scmp.ne.s32.totalorder %s71, %s72
      %p84 = scmp.eq.s32.totalorder %s20, 1
      %p85 = por %p83, %p84
      %p87 = scmp.ne.s32.totalorder %s72, %s86
      %p88 = scmp.eq.s32.totalorder %s20, 0
      %p89 = por %p87, %p88
      %s91 = sadd.s32 %s90, 1
      %p94 = scmp.eq.s32.totalorder %s14, 1
      %p95 = scmp.ne.s32.totalorder %s90, %s92
      %p96 = scmp.eq.s32.totalorder %s14, 0
      %p97 = por %p95, %p96
      %p98 = scmp.ne.s32.totalorder %s90, %s92
      %p99 = scmp.eq.s32.totalorder %s19, 1
      %p100 = por %p98, %p99
      %p101 = scmp.ne.s32.totalorder %s92, %s93
      %p102 = scmp.eq.s32.totalorder %s19, 0
      %p103 = por %p101, %p102
      %p104 = scmp.ne.s32.totalorder %s92, %s93
      %p105 = scmp.eq.s32.totalorder %s20, 1
      %p106 = por %p104, %p105
      %p108 = scmp.ne.s32.totalorder %s93, %s107
      %p109 = scmp.eq.s32.totalorder %s20, 0
      %p110 = por %p108, %p109
      %s112 = sadd.s32 %s111, 1
      %p115 = scmp.eq.s32.totalorder %s14, 1
      %p116 = scmp.ne.s32.totalorder %s111, %s113
      %p117 = scmp.eq.s32.totalorder %s14, 0
      %p118 = por %p116, %p117
      %p119 = scmp.ne.s32.totalorder %s111, %s113
      %p120 = scmp.eq.s32.totalorder %s19, 1
      %p121 = por %p119, %p120
      %p122 = scmp.ne.s32.totalorder %s113, %s114
      %p123 = scmp.eq.s32.totalorder %s19, 0
      %p124 = por %p122, %p123
      %p125 = scmp.ne.s32.totalorder %s113, %s114
      %p126 = scmp.eq.s32.totalorder %s20, 1
      %p127 = por %p125, %p126
      %p129 = scmp.ne.s32.totalorder %s114, %s128
      %p130 = scmp.eq.s32.totalorder %s20, 0
      %p131 = por %p129, %p130
      %s133 = sadd.s32 %s132, 1
      %p136 = scmp.eq.s32.totalorder %s14, 1
      %p137 = scmp.ne.s32.totalorder %s132, %s134
      %p138 = scmp.eq.s32.totalorder %s14, 0
      %p139 = por %p137, %p138
      %p140 = scmp.ne.s32.totalorder %s132, %s134
      %p141 = scmp.eq.s32.totalorder %s19, 1
      %p142 = por %p140, %p141
      %p143 = scmp.ne.s32.totalorder %s134, %s135
      %p144 = scmp.eq.s32.totalorder %s19, 0
      %p145 = por %p143, %p144
      %p146 = scmp.ne.s32.totalorder %s134, %s135
      %p147 = scmp.eq.s32.totalorder %s20, 1
      %p148 = por %p146, %p147
      %p150 = scmp.ne.s32.totalorder %s135, %s149
      %p151 = scmp.eq.s32.totalorder %s20, 0
      %p152 = por %p150, %p151
      %s154 = sadd.s32 %s153, 1
      %p157 = scmp.eq.s32.totalorder %s14, 1
      %p158 = scmp.ne.s32.totalorder %s153, %s155
      %p159 = scmp.eq.s32.totalorder %s14, 0
      %p160 = por %p158, %p159
      %p161 = scmp.ne.s32.totalorder %s153, %s155
      %p162 = scmp.eq.s32.totalorder %s19, 1
      %p163 = por %p161, %p162
      %p164 = scmp.ne.s32.totalorder %s155, %s156
      %p165 = scmp.eq.s32.totalorder %s19, 0
      %p166 = por %p164, %p165
      %p167 = scmp.ne.s32.totalorder %s155, %s156
      %p168 = scmp.eq.s32.totalorder %s20, 1
      %p169 = por %p167, %p168
      %p171 = scmp.ne.s32.totalorder %s156, %s170
      %p172 = scmp.eq.s32.totalorder %s20, 0
      %p173 = por %p171, %p172
      %p174 = scmp.le.s32.totalorder 1, %s14
      %p175 = scmp.lt.s32.totalorder %s14, 3
      %p176 = pnand %p174, %p175
      %p177 = pneg %p176
      // Predicated region
      $region9: #{_lambda_.1} parent=5 // pred_check
        _
      $region10: #{_lambda_.1} parent=5 // pred_check_branch
        %179 = sbr.rel (%p176) target = $region12
      $region11: #{_lambda_.1} parent=5 // pred_region
        %s180 = ssub.s32 %s14, 1
        // Predicated region
        $region13: #{_lambda_.1} parent=11 // pred_check
          %p181 = pneg %p61
        $region14: #{_lambda_.1} parent=11 // pred_check_branch
          %183 = sbr.rel (%p181) target = $region16
        $region15: #{_lambda_.1} parent=11 // pred_region
          %s185 = ssub.s32 2048, 2048
          %186 = vsyncadd [#allocation6], %s185
          %s187 = sshll.u32 [#allocation5], 4
          %s188 = int_to_ptr.vmem [resolvable:$true] %s187
          %193 = dma.hbm_to_vmem [thread:$0]  %s1, 2048, %s188, [#allocation6], 512, 512, 32
        $region16: #{_lambda_.1} parent=11 // pred_fallthru
          _
        // Predicated region
        $region17: #{_lambda_.1} parent=11 // pred_check
          %p194 = pneg %p82
        $region18: #{_lambda_.1} parent=11 // pred_check_branch
          %196 = sbr.rel (%p194) target = $region20
        $region19: #{_lambda_.1} parent=11 // pred_region
          _
        $region20: #{_lambda_.1} parent=11 // pred_fallthru
          _
        // Predicated region
        $region21: #{_lambda_.1} parent=11 // pred_check
          %p197 = pneg %p103
        $region22: #{_lambda_.1} parent=11 // pred_check_branch
          %199 = sbr.rel (%p197) target = $region24
        $region23: #{_lambda_.1} parent=11 // pred_region
          _
        $region24: #{_lambda_.1} parent=11 // pred_fallthru
          _
        // Predicated region
        $region25: #{_lambda_.1} parent=11 // pred_check
          %p200 = pneg %p124
        $region26: #{_lambda_.1} parent=11 // pred_check_branch
          %202 = sbr.rel (%p200) target = $region28
        $region27: #{_lambda_.1} parent=11 // pred_region
          %s204 = ssub.s32 2048, 2048
          %205 = vsyncadd [#allocation8], %s204
          %s206 = sshll.u32 [#allocation7], 4
          %s207 = int_to_ptr.vmem [resolvable:$true] %s206
          %212 = dma.hbm_to_vmem [thread:$0]  %s4, 2048, %s207, [#allocation8], 128, 128, 8
        $region28: #{_lambda_.1} parent=11 // pred_fallthru
          _
        // Predicated region
        $region29: #{_lambda_.1} parent=11 // pred_check
          %p213 = pneg %p145
        $region30: #{_lambda_.1} parent=11 // pred_check_branch
          %215 = sbr.rel (%p213) target = $region32
        $region31: #{_lambda_.1} parent=11 // pred_region
          _
        $region32: #{_lambda_.1} parent=11 // pred_fallthru
          _
      $region12: #{_lambda_.1} parent=5 // pred_fallthru
        _
      %p216 = scmp.lt.s32.totalorder %s14, 2
      // Predicated region
      $region33: #{_lambda_.1} parent=5 // pred_check
        %p217 = pneg %p216
      $region34: #{_lambda_.1} parent=5 // pred_check_branch
        %219 = sbr.rel (%p217) target = $region36
      $region35: #{_lambda_.1} parent=5 // pred_region
        // Predicated region
        $region37: #{_lambda_.1} parent=35 // pred_check
          %p220 = pneg %p34
        $region38: #{_lambda_.1} parent=35 // pred_check_branch
          %222 = sbr.rel (%p220) target = $region40
        $region39: #{_lambda_.1} parent=35 // pred_region
          %s223 = smul.u32 4, %s14
          %p224 = scmp.lt.s32.totalorder %s223, 7
          %s225 = scalar_select %p224, %s223, 7
          %s226 = smul.addr %s225, 8
          %s227 = scalar_lea.vmem %s0, %s226
          %s228 = smul.u32 4, %s14
        $region40: #{_lambda_.1} parent=35 // pred_fallthru
          _
      $region36: #{_lambda_.1} parent=5 // pred_fallthru
        _
      %p229 = scmp.le.s32.totalorder 1, %s14
      %p230 = scmp.lt.s32.totalorder %s14, 3
      %p231 = pnand %p229, %p230
      %p232 = pneg %p231
      // Predicated region
      $region41: #{_lambda_.1} parent=5 // pred_check
        _
      $region42: #{_lambda_.1} parent=5 // pred_check_branch
        %234 = sbr.rel (%p231) target = $region44
      $region43: #{_lambda_.1} parent=5 // pred_region
        %s235 = ssub.s32 %s14, 1
        // Predicated region
        $region45: #{_lambda_.1} parent=43 // pred_check
          %p236 = pneg %p61
        $region46: #{_lambda_.1} parent=43 // pred_check_branch
          %238 = sbr.rel (%p236) target = $region48
        $region47: #{_lambda_.1} parent=43 // pred_region
          %239 = dma.done [#allocation6], 2048
        $region48: #{_lambda_.1} parent=43 // pred_fallthru
          _
        // Predicated region
        $region49: #{_lambda_.1} parent=43 // pred_check
          %p240 = pneg %p124
        $region50: #{_lambda_.1} parent=43 // pred_check_branch
          %242 = sbr.rel (%p240) target = $region52
        $region51: #{_lambda_.1} parent=43 // pred_region
          %243 = dma.done [#allocation8], 2048
        $region52: #{_lambda_.1} parent=43 // pred_fallthru
          _
        %s244 = smul.u32 4, %s19
        %p245 = scmp.lt.s32.totalorder %s244, 7
        %s246 = scalar_select %p245, %s244, 7
        %s247 = smul.addr %s246, 8
        %s248 = scalar_lea.vmem %s0, %s247
        %p249 = pneg %p40
        %p250 = pneg %p37
        %p251 = pneg %p61
        %p252 = pneg %p58
        %p253 = pneg %p82
        %p254 = pneg %p79
        %p255 = pneg %p103
        %p256 = pneg %p100
        %p257 = pneg %p124
        %p258 = pneg %p121
        %p259 = pneg %p145
        %p260 = pneg %p142
        %p261 = pneg %p166
        %p262 = pneg %p163
        %s263 = smul.u32 4, %s19
        %p264 = scmp.lt.s32.totalorder %s263, 7
        %s265 = scalar_select %p264, %s263, 7
        %s266 = smul.addr %s265, 8
        %s267 = scalar_lea.vmem %s0, %s266
        %s268 = smul.u32 4, %s19
        %p269 = scmp.eq.s32.totalorder %s19, 0
        // Predicated region
        $region53: #{_lambda_.1} parent=43 // pred_check
          %p270 = pneg %p269
        $region54: #{_lambda_.1} parent=43 // pred_check_branch
          %272 = sbr.rel (%p270) target = $region56
        $region55: #{_lambda_.1} parent=43 // pred_region
          %273 = vst [vmem:[#allocation2] sm:$0xff] 0.0
          %274 = vst [vmem:[#allocation3] sm:$0xff] 0.0
        $region56: #{_lambda_.1} parent=43 // pred_fallthru
          _
        %v275 = vld [vmem:[%s267] sm:$0xff]
        %v276 = vld [vmem:[%s267 + $0x8] sm:$0xff]
        %v277 = vld [vmem:[%s267 + $0x10] sm:$0xff]
        %v278 = vld [vmem:[%s267 + $0x18] sm:$0xff]
        %v279 = vld [vmem:[#allocation5] sm:$0xff]
        %v280 = vld [vmem:[#allocation5 + $0x8] sm:$0xff]
        %v281 = vld [vmem:[#allocation5 + $0x10] sm:$0xff]
        %v282 = vld [vmem:[#allocation5 + $0x18] sm:$0xff]
        %v283 = vld [vmem:[#allocation5 + $0x20] sm:$0xff]
        %v284 = vld [vmem:[#allocation5 + $0x28] sm:$0xff]
        %v285 = vld [vmem:[#allocation5 + $0x30] sm:$0xff]
        %v286 = vld [vmem:[#allocation5 + $0x38] sm:$0xff]
        %v287 = vld [vmem:[#allocation5 + $0x40] sm:$0xff]
        %v288 = vld [vmem:[#allocation5 + $0x48] sm:$0xff]
        %v289 = vld [vmem:[#allocation5 + $0x50] sm:$0xff]
        %v290 = vld [vmem:[#allocation5 + $0x58] sm:$0xff]
        %v291 = vld [vmem:[#allocation5 + $0x60] sm:$0xff]
        %v292 = vld [vmem:[#allocation5 + $0x68] sm:$0xff]
        %v293 = vld [vmem:[#allocation5 + $0x70] sm:$0xff]
        %v294 = vld [vmem:[#allocation5 + $0x78] sm:$0xff]
        %v295 = vld [vmem:[%s3] sm:$0xf]
        %v297 = vlaneseq
        %v298 = vshrl.u32 %v297, 7
        %v299 = vsub.s32 0, %v298
        %v300 = vrot.slane %v295, %v299
        %v301 = vlaneseq
        %v302 = vshrl.u32 %v301, 7
        %v303 = vsub.s32 1, %v302
        %v304 = vrot.slane %v295, %v303
        %v305 = vlaneseq
        %v306 = vshrl.u32 %v305, 7
        %v307 = vsub.s32 2, %v306
        %v308 = vrot.slane %v295, %v307
        %v309 = vlaneseq
        %v310 = vshrl.u32 %v309, 7
        %v311 = vsub.s32 3, %v310
        %v312 = vrot.slane %v295, %v311
        %vm317 = vcmask 261120
        %v319 = vsel %vm317, %v275, 0
        %v322 = vsel %vm317, %v276, 0
        %v325 = vsel %vm317, %v277, 0
        %v328 = vsel %vm317, %v278, 0
        %330 = vmatprep.subr.mxu0 0.0
        %331 = vmatpush1.msra.mxu0 0.0
        %332 = vmatprep.subr.mxu0 0.0
        %333 = vmatpush1.msra.mxu0 0.0
        %334 = vmatprep.subr.mxu0 0.0
        %335 = vmatpush1.msra.mxu0 0.0
        %336 = vmatprep.subr.mxu0 0.0
        %337 = vmatpush1.msra.mxu0 0.0
        %338 = vmatprep.subr.mxu0 0.0
        %339 = vmatpush1.msra.mxu0 0.0
        %340 = vmatprep.subr.mxu0 0.0
        %341 = vmatpush1.msra.mxu0 0.0
        %342 = vmatprep.subr.mxu0 0.0
        %343 = vmatpush1.msra.mxu0 0.0
        %344 = vmatprep.subr.mxu0 0.0
        %345 = vmatpush1.msra.mxu0 0.0
        %346 = vmatprep.subr.mxu0 0.0
        %347 = vmatpush1.msra.mxu0 0.0
        %348 = vmatprep.subr.mxu0 0.0
        %349 = vmatpush1.msra.mxu0 0.0
        %350 = vmatprep.subr.mxu0 0.0
        %351 = vmatpush1.msra.mxu0 0.0
        %352 = vmatprep.subr.mxu0 0.0
        %353 = vmatpush1.msra.mxu0 0.0
        %354 = vmatprep.subr.mxu0 %v292
        %355 = vmatpush1.msra.mxu0 %v291
        %356 = vmatprep.subr.mxu0 %v288
        %357 = vmatpush1.msra.mxu0 %v287
        %358 = vmatprep.subr.mxu0 %v284
        %359 = vmatpush1.msra.mxu0 %v283
        %360 = vmatprep.subr.mxu0 %v280
        %361 = vmatpush1.msra.mxu0 %v279
        %362 = vmatprep.subr.mxu0 0.0
        %363 = vmatpush2.msra.mxu0 0.0
        %364 = vmatprep.subr.mxu0 0.0
        %365 = vmatpush2.msra.mxu0 0.0
        %366 = vmatprep.subr.mxu0 0.0
        %367 = vmatpush2.msra.mxu0 0.0
        %368 = vmatprep.subr.mxu0 0.0
        %369 = vmatpush2.msra.mxu0 0.0
        %370 = vmatprep.subr.mxu0 0.0
        %371 = vmatpush2.msra.mxu0 0.0
        %372 = vmatprep.subr.mxu0 0.0
        %373 = vmatpush2.msra.mxu0 0.0
        %374 = vmatprep.subr.mxu0 0.0
        %375 = vmatpush2.msra.mxu0 0.0
        %376 = vmatprep.subr.mxu0 0.0
        %377 = vmatpush2.msra.mxu0 0.0
        %378 = vmatprep.subr.mxu0 0.0
        %379 = vmatpush2.msra.mxu0 0.0
        %380 = vmatprep.subr.mxu0 0.0
        %381 = vmatpush2.msra.mxu0 0.0
        %382 = vmatprep.subr.mxu0 0.0
        %383 = vmatpush2.msra.mxu0 0.0
        %384 = vmatprep.subr.mxu0 0.0
        %385 = vmatpush2.msra.mxu0 0.0
        %386 = vmatprep.subr.mxu0 0.0
        %387 = vmatpush2.msra.mxu0 0.0
        %388 = vmatprep.subr.mxu0 0.0
        %389 = vmatpush2.msra.mxu0 0.0
        %390 = vmatprep.subr.mxu0 0.0
        %391 = vmatpush2.msra.mxu0 0.0
        %392 = vmatprep.subr.mxu0 0.0
        %393 = vmatpush2.msra.mxu0 0.0
        %394 = vmatprep.mubr.f32.mxu0 0.0
        %395 = vmatmul.mubr.f32.gmra.mxu0 %v319
        %v396 = vpop.f32.mrf.mxu0
        %v397 = vadd.f32 %v300, %v396
        %v398 = vpop.f32.mrf.mxu0
        %v399 = vadd.f32 %v304, %v398
        %400 = vmatprep.mubr.f32.mxu0 0.0
        %401 = vmatmul.mubr.f32.gmra.mxu0 %v322
        %v402 = vpop.f32.mrf.mxu0
        %v403 = vadd.f32 %v300, %v402
        %v404 = vpop.f32.mrf.mxu0
        %v405 = vadd.f32 %v304, %v404
        %406 = vmatprep.mubr.f32.mxu0 0.0
        %407 = vmatmul.mubr.f32.gmra.mxu0 %v325
        %v408 = vpop.f32.mrf.mxu0
        %v409 = vadd.f32 %v300, %v408
        %v410 = vpop.f32.mrf.mxu0
        %v411 = vadd.f32 %v304, %v410
        %412 = vmatprep.mubr.f32.mxu0 0.0
        %413 = vmatmul.mubr.f32.gmra.mxu0 %v328
        %v414 = vpop.f32.mrf.mxu0
        %v415 = vadd.f32 %v300, %v414
        %v416 = vpop.f32.mrf.mxu0
        %v417 = vadd.f32 %v304, %v416
        %418 = vdwg.mxu0
        %419 = vmatprep.subr.mxu0 0.0
        %420 = vmatpush1.msra.mxu0 0.0
        %421 = vmatprep.subr.mxu0 0.0
        %422 = vmatpush1.msra.mxu0 0.0
        %423 = vmatprep.subr.mxu0 0.0
        %424 = vmatpush1.msra.mxu0 0.0
        %425 = vmatprep.subr.mxu0 0.0
        %426 = vmatpush1.msra.mxu0 0.0
        %427 = vmatprep.subr.mxu0 0.0
        %428 = vmatpush1.msra.mxu0 0.0
        %429 = vmatprep.subr.mxu0 0.0
        %430 = vmatpush1.msra.mxu0 0.0
        %431 = vmatprep.subr.mxu0 0.0
        %432 = vmatpush1.msra.mxu0 0.0
        %433 = vmatprep.subr.mxu0 0.0
        %434 = vmatpush1.msra.mxu0 0.0
        %435 = vmatprep.subr.mxu0 0.0
        %436 = vmatpush1.msra.mxu0 0.0
        %437 = vmatprep.subr.mxu0 0.0
        %438 = vmatpush1.msra.mxu0 0.0
        %439 = vmatprep.subr.mxu0 0.0
        %440 = vmatpush1.msra.mxu0 0.0
        %441 = vmatprep.subr.mxu0 0.0
        %442 = vmatpush1.msra.mxu0 0.0
        %443 = vmatprep.subr.mxu0 %v294
        %444 = vmatpush1.msra.mxu0 %v293
        %445 = vmatprep.subr.mxu0 %v290
        %446 = vmatpush1.msra.mxu0 %v289
        %447 = vmatprep.subr.mxu0 %v286
        %448 = vmatpush1.msra.mxu0 %v285
        %449 = vmatprep.subr.mxu0 %v282
        %450 = vmatpush1.msra.mxu0 %v281
        %451 = vmatprep.subr.mxu0 0.0
        %452 = vmatpush2.msra.mxu0 0.0
        %453 = vmatprep.subr.mxu0 0.0
        %454 = vmatpush2.msra.mxu0 0.0
        %455 = vmatprep.subr.mxu0 0.0
        %456 = vmatpush2.msra.mxu0 0.0
        %457 = vmatprep.subr.mxu0 0.0
        %458 = vmatpush2.msra.mxu0 0.0
        %459 = vmatprep.subr.mxu0 0.0
        %460 = vmatpush2.msra.mxu0 0.0
        %461 = vmatprep.subr.mxu0 0.0
        %462 = vmatpush2.msra.mxu0 0.0
        %463 = vmatprep.subr.mxu0 0.0
        %464 = vmatpush2.msra.mxu0 0.0
        %465 = vmatprep.subr.mxu0 0.0
        %466 = vmatpush2.msra.mxu0 0.0
        %467 = vmatprep.subr.mxu0 0.0
        %468 = vmatpush2.msra.mxu0 0.0
        %469 = vmatprep.subr.mxu0 0.0
        %470 = vmatpush2.msra.mxu0 0.0
        %471 = vmatprep.subr.mxu0 0.0
        %472 = vmatpush2.msra.mxu0 0.0
        %473 = vmatprep.subr.mxu0 0.0
        %474 = vmatpush2.msra.mxu0 0.0
        %475 = vmatprep.subr.mxu0 0.0
        %476 = vmatpush2.msra.mxu0 0.0
        %477 = vmatprep.subr.mxu0 0.0
        %478 = vmatpush2.msra.mxu0 0.0
        %479 = vmatprep.subr.mxu0 0.0
        %480 = vmatpush2.msra.mxu0 0.0
        %481 = vmatprep.subr.mxu0 0.0
        %482 = vmatpush2.msra.mxu0 0.0
        %483 = vmatprep.mubr.f32.mxu0 0.0
        %484 = vmatmul.mubr.f32.gmra.mxu0 %v319
        %v485 = vpop.f32.mrf.mxu0
        %v486 = vadd.f32 %v308, %v485
        %v487 = vpop.f32.mrf.mxu0
        %v488 = vadd.f32 %v312, %v487
        %489 = vmatprep.mubr.f32.mxu0 0.0
        %490 = vmatmul.mubr.f32.gmra.mxu0 %v322
        %v491 = vpop.f32.mrf.mxu0
        %v492 = vadd.f32 %v308, %v491
        %v493 = vpop.f32.mrf.mxu0
        %v494 = vadd.f32 %v312, %v493
        %495 = vmatprep.mubr.f32.mxu0 0.0
        %496 = vmatmul.mubr.f32.gmra.mxu0 %v325
        %v497 = vpop.f32.mrf.mxu0
        %v498 = vadd.f32 %v308, %v497
        %v499 = vpop.f32.mrf.mxu0
        %v500 = vadd.f32 %v312, %v499
        %501 = vmatprep.mubr.f32.mxu0 0.0
        %502 = vmatmul.mubr.f32.gmra.mxu0 %v328
        %v503 = vpop.f32.mrf.mxu0
        %v504 = vadd.f32 %v308, %v503
        %v505 = vpop.f32.mrf.mxu0
        %v506 = vadd.f32 %v312, %v505
        %507 = vdwg.mxu0
        %508 = vst [vmem:[#allocation4] sm:$0xff] %v397
        %509 = vst [vmem:[#allocation4 + $0x8] sm:$0xff] %v399
        %510 = vst [vmem:[#allocation4 + $0x10] sm:$0xff] %v486
        %511 = vst [vmem:[#allocation4 + $0x18] sm:$0xff] %v488
        %512 = vst [vmem:[#allocation4 + $0x20] sm:$0xff] %v403
        %513 = vst [vmem:[#allocation4 + $0x28] sm:$0xff] %v405
        %514 = vst [vmem:[#allocation4 + $0x30] sm:$0xff] %v492
        %515 = vst [vmem:[#allocation4 + $0x38] sm:$0xff] %v494
        %516 = vst [vmem:[#allocation4 + $0x40] sm:$0xff] %v409
        %517 = vst [vmem:[#allocation4 + $0x48] sm:$0xff] %v411
        %518 = vst [vmem:[#allocation4 + $0x50] sm:$0xff] %v498
        %519 = vst [vmem:[#allocation4 + $0x58] sm:$0xff] %v500
        %520 = vst [vmem:[#allocation4 + $0x60] sm:$0xff] %v415
        %521 = vst [vmem:[#allocation4 + $0x68] sm:$0xff] %v417
        %522 = vst [vmem:[#allocation4 + $0x70] sm:$0xff] %v504
        %523 = vst [vmem:[#allocation4 + $0x78] sm:$0xff] %v506
        %v524 = vld [vmem:[%s2] sm:$0xff]
        %v525 = vld [vmem:[%s2 + $0x8] sm:$0xff]
        %v526 = vld [vmem:[%s2 + $0x10] sm:$0xff]
        %v527 = vld [vmem:[%s2 + $0x18] sm:$0xff]
        %v528 = vld [vmem:[%s2 + $0x20] sm:$0xff]
        %v529 = vld [vmem:[%s2 + $0x28] sm:$0xff]
        %v530 = vld [vmem:[%s2 + $0x30] sm:$0xff]
        %v531 = vld [vmem:[%s2 + $0x38] sm:$0xff]
        %v532 = vld [vmem:[%s2 + $0x40] sm:$0xff]
        %v533 = vld [vmem:[%s2 + $0x48] sm:$0xff]
        %v534 = vld [vmem:[%s2 + $0x50] sm:$0xff]
        %v535 = vld [vmem:[%s2 + $0x58] sm:$0xff]
        %v536 = vld [vmem:[%s2 + $0x60] sm:$0xff]
        %v537 = vld [vmem:[%s2 + $0x68] sm:$0xff]
        %v538 = vld [vmem:[%s2 + $0x70] sm:$0xff]
        %v539 = vld [vmem:[%s2 + $0x78] sm:$0xff]
        %v540 = vld [vmem:[%s2 + $0x80] sm:$0xff]
        %v541 = vld [vmem:[%s2 + $0x88] sm:$0xff]
        %v542 = vld [vmem:[%s2 + $0x90] sm:$0xff]
        %v543 = vld [vmem:[%s2 + $0x98] sm:$0xff]
        %v544 = vld [vmem:[%s2 + $0xa0] sm:$0xff]
        %v545 = vld [vmem:[%s2 + $0xa8] sm:$0xff]
        %v546 = vld [vmem:[%s2 + $0xb0] sm:$0xff]
        %v547 = vld [vmem:[%s2 + $0xb8] sm:$0xff]
        %v548 = vld [vmem:[%s2 + $0xc0] sm:$0xff]
        %v549 = vld [vmem:[%s2 + $0xc8] sm:$0xff]
        %v550 = vld [vmem:[%s2 + $0xd0] sm:$0xff]
        %v551 = vld [vmem:[%s2 + $0xd8] sm:$0xff]
        %v552 = vld [vmem:[%s2 + $0xe0] sm:$0xff]
        %v553 = vld [vmem:[%s2 + $0xe8] sm:$0xff]
        %v554 = vld [vmem:[%s2 + $0xf0] sm:$0xff]
        %v555 = vld [vmem:[%s2 + $0xf8] sm:$0xff]
        %v556 = vld [vmem:[%s2 + $0x100] sm:$0xff]
        %v557 = vld [vmem:[%s2 + $0x108] sm:$0xff]
        %v558 = vld [vmem:[%s2 + $0x110] sm:$0xff]
        %v559 = vld [vmem:[%s2 + $0x118] sm:$0xff]
        %v560 = vld [vmem:[%s2 + $0x120] sm:$0xff]
        %v561 = vld [vmem:[%s2 + $0x128] sm:$0xff]
        %v562 = vld [vmem:[%s2 + $0x130] sm:$0xff]
        %v563 = vld [vmem:[%s2 + $0x138] sm:$0xff]
        %v564 = vld [vmem:[%s2 + $0x140] sm:$0xff]
        %v565 = vld [vmem:[%s2 + $0x148] sm:$0xff]
        %v566 = vld [vmem:[%s2 + $0x150] sm:$0xff]
        %v567 = vld [vmem:[%s2 + $0x158] sm:$0xff]
        %v568 = vld [vmem:[%s2 + $0x160] sm:$0xff]
        %v569 = vld [vmem:[%s2 + $0x168] sm:$0xff]
        %v570 = vld [vmem:[%s2 + $0x170] sm:$0xff]
        %v571 = vld [vmem:[%s2 + $0x178] sm:$0xff]
        %v572 = vld [vmem:[%s2 + $0x180] sm:$0xff]
        %v573 = vld [vmem:[%s2 + $0x188] sm:$0xff]
        %v574 = vld [vmem:[%s2 + $0x190] sm:$0xff]
        %v575 = vld [vmem:[%s2 + $0x198] sm:$0xff]
        %v576 = vld [vmem:[%s2 + $0x1a0] sm:$0xff]
        %v577 = vld [vmem:[%s2 + $0x1a8] sm:$0xff]
        %v578 = vld [vmem:[%s2 + $0x1b0] sm:$0xff]
        %v579 = vld [vmem:[%s2 + $0x1b8] sm:$0xff]
        %v580 = vld [vmem:[%s2 + $0x1c0] sm:$0xff]
        %v581 = vld [vmem:[%s2 + $0x1c8] sm:$0xff]
        %v582 = vld [vmem:[%s2 + $0x1d0] sm:$0xff]
        %v583 = vld [vmem:[%s2 + $0x1d8] sm:$0xff]
        %v584 = vld [vmem:[%s2 + $0x1e0] sm:$0xff]
        %v585 = vld [vmem:[%s2 + $0x1e8] sm:$0xff]
        %v586 = vld [vmem:[%s2 + $0x1f0] sm:$0xff]
        %v587 = vld [vmem:[%s2 + $0x1f8] sm:$0xff]
        %v588 = vld [vmem:[#allocation2] sm:$0xff]
        %v589 = vld [vmem:[#allocation3] sm:$0xff]
        %s590 = smul.u32 0, 4
        %s591 = smul.addr %s590, 8
        %s592 = scalar_lea.vmem [#allocation4], %s591
        %v593 = vld [vmem:[%s592] sm:$0xff]
        %v594 = vld [vmem:[%s592 + $0x8] sm:$0xff]
        %v595 = vld [vmem:[%s592 + $0x10] sm:$0xff]
        %v596 = vld [vmem:[%s592 + $0x18] sm:$0xff]
        %597 = vmatprep.subr.mxu0 %v585
        %598 = vmatpush1.msra.mxu0 %v584
        %599 = vmatprep.subr.mxu0 %v581
        %600 = vmatpush1.msra.mxu0 %v580
        %601 = vmatprep.subr.mxu0 %v577
        %602 = vmatpush1.msra.mxu0 %v576
        %603 = vmatprep.subr.mxu0 %v573
        %604 = vmatpush1.msra.mxu0 %v572
        %605 = vmatprep.subr.mxu0 %v569
        %606 = vmatpush1.msra.mxu0 %v568
        %607 = vmatprep.subr.mxu0 %v565
        %608 = vmatpush1.msra.mxu0 %v564
        %609 = vmatprep.subr.mxu0 %v561
        %610 = vmatpush1.msra.mxu0 %v560
        %611 = vmatprep.subr.mxu0 %v557
        %612 = vmatpush1.msra.mxu0 %v556
        %613 = vmatprep.subr.mxu0 %v553
        %614 = vmatpush1.msra.mxu0 %v552
        %615 = vmatprep.subr.mxu0 %v549
        %616 = vmatpush1.msra.mxu0 %v548
        %617 = vmatprep.subr.mxu0 %v545
        %618 = vmatpush1.msra.mxu0 %v544
        %619 = vmatprep.subr.mxu0 %v541
        %620 = vmatpush1.msra.mxu0 %v540
        %621 = vmatprep.subr.mxu0 %v537
        %622 = vmatpush1.msra.mxu0 %v536
        %623 = vmatprep.subr.mxu0 %v533
        %624 = vmatpush1.msra.mxu0 %v532
        %625 = vmatprep.subr.mxu0 %v529
        %626 = vmatpush1.msra.mxu0 %v528
        %627 = vmatprep.subr.mxu0 %v525
        %628 = vmatpush1.msra.mxu0 %v524
        %629 = vmatprep.subr.mxu0 0.0
        %630 = vmatpush2.msra.mxu0 0.0
        %631 = vmatprep.subr.mxu0 0.0
        %632 = vmatpush2.msra.mxu0 0.0
        %633 = vmatprep.subr.mxu0 0.0
        %634 = vmatpush2.msra.mxu0 0.0
        %635 = vmatprep.subr.mxu0 0.0
        %636 = vmatpush2.msra.mxu0 0.0
        %637 = vmatprep.subr.mxu0 0.0
        %638 = vmatpush2.msra.mxu0 0.0
        %639 = vmatprep.subr.mxu0 0.0
        %640 = vmatpush2.msra.mxu0 0.0
        %641 = vmatprep.subr.mxu0 0.0
        %642 = vmatpush2.msra.mxu0 0.0
        %643 = vmatprep.subr.mxu0 0.0
        %644 = vmatpush2.msra.mxu0 0.0
        %645 = vmatprep.subr.mxu0 0.0
        %646 = vmatpush2.msra.mxu0 0.0
        %647 = vmatprep.subr.mxu0 0.0
        %648 = vmatpush2.msra.mxu0 0.0
        %649 = vmatprep.subr.mxu0 0.0
        %650 = vmatpush2.msra.mxu0 0.0
        %651 = vmatprep.subr.mxu0 0.0
        %652 = vmatpush2.msra.mxu0 0.0
        %653 = vmatprep.subr.mxu0 0.0
        %654 = vmatpush2.msra.mxu0 0.0
        %655 = vmatprep.subr.mxu0 0.0
        %656 = vmatpush2.msra.mxu0 0.0
        %657 = vmatprep.subr.mxu0 0.0
        %658 = vmatpush2.msra.mxu0 0.0
        %659 = vmatprep.subr.mxu0 0.0
        %660 = vmatpush2.msra.mxu0 0.0
        %661 = vmatprep.mubr.f32.mxu0 0.0
        %662 = vmatmul.mubr.f32.gmra.mxu0 %v588
        %v663 = vpop.f32.mrf.mxu0
        %v664 = vadd.f32 0.0, %v663
        %v665 = vpop.f32.mrf.mxu0
        %v666 = vadd.f32 0.0, %v665
        %667 = vdwg.mxu0
        %668 = vmatprep.subr.mxu0 %v587
        %669 = vmatpush1.msra.mxu0 %v586
        %670 = vmatprep.subr.mxu0 %v583
        %671 = vmatpush1.msra.mxu0 %v582
        %672 = vmatprep.subr.mxu0 %v579
        %673 = vmatpush1.msra.mxu0 %v578
        %674 = vmatprep.subr.mxu0 %v575
        %675 = vmatpush1.msra.mxu0 %v574
        %676 = vmatprep.subr.mxu0 %v571
        %677 = vmatpush1.msra.mxu0 %v570
        %678 = vmatprep.subr.mxu0 %v567
        %679 = vmatpush1.msra.mxu0 %v566
        %680 = vmatprep.subr.mxu0 %v563
        %681 = vmatpush1.msra.mxu0 %v562
        %682 = vmatprep.subr.mxu0 %v559
        %683 = vmatpush1.msra.mxu0 %v558
        %684 = vmatprep.subr.mxu0 %v555
        %685 = vmatpush1.msra.mxu0 %v554
        %686 = vmatprep.subr.mxu0 %v551
        %687 = vmatpush1.msra.mxu0 %v550
        %688 = vmatprep.subr.mxu0 %v547
        %689 = vmatpush1.msra.mxu0 %v546
        %690 = vmatprep.subr.mxu0 %v543
        %691 = vmatpush1.msra.mxu0 %v542
        %692 = vmatprep.subr.mxu0 %v539
        %693 = vmatpush1.msra.mxu0 %v538
        %694 = vmatprep.subr.mxu0 %v535
        %695 = vmatpush1.msra.mxu0 %v534
        %696 = vmatprep.subr.mxu0 %v531
        %697 = vmatpush1.msra.mxu0 %v530
        %698 = vmatprep.subr.mxu0 %v527
        %699 = vmatpush1.msra.mxu0 %v526
        %700 = vmatprep.subr.mxu0 0.0
        %701 = vmatpush2.msra.mxu0 0.0
        %702 = vmatprep.subr.mxu0 0.0
        %703 = vmatpush2.msra.mxu0 0.0
        %704 = vmatprep.subr.mxu0 0.0
        %705 = vmatpush2.msra.mxu0 0.0
        %706 = vmatprep.subr.mxu0 0.0
        %707 = vmatpush2.msra.mxu0 0.0
        %708 = vmatprep.subr.mxu0 0.0
        %709 = vmatpush2.msra.mxu0 0.0
        %710 = vmatprep.subr.mxu0 0.0
        %711 = vmatpush2.msra.mxu0 0.0
        %712 = vmatprep.subr.mxu0 0.0
        %713 = vmatpush2.msra.mxu0 0.0
        %714 = vmatprep.subr.mxu0 0.0
        %715 = vmatpush2.msra.mxu0 0.0
        %716 = vmatprep.subr.mxu0 0.0
        %717 = vmatpush2.msra.mxu0 0.0
        %718 = vmatprep.subr.mxu0 0.0
        %719 = vmatpush2.msra.mxu0 0.0
        %720 = vmatprep.subr.mxu0 0.0
        %721 = vmatpush2.msra.mxu0 0.0
        %722 = vmatprep.subr.mxu0 0.0
        %723 = vmatpush2.msra.mxu0 0.0
        %724 = vmatprep.subr.mxu0 0.0
        %725 = vmatpush2.msra.mxu0 0.0
        %726 = vmatprep.subr.mxu0 0.0
        %727 = vmatpush2.msra.mxu0 0.0
        %728 = vmatprep.subr.mxu0 0.0
        %729 = vmatpush2.msra.mxu0 0.0
        %730 = vmatprep.subr.mxu0 0.0
        %731 = vmatpush2.msra.mxu0 0.0
        %732 = vmatprep.mubr.f32.mxu0 0.0
        %733 = vmatmul.mubr.f32.gmra.mxu0 %v588
        %v734 = vpop.f32.mrf.mxu0
        %v735 = vadd.f32 0.0, %v734
        %v736 = vpop.f32.mrf.mxu0
        %v737 = vadd.f32 0.0, %v736
        %738 = vdwg.mxu0
        %v739 = vadd.f32 %v593, %v664
        %v740 = vadd.f32 %v594, %v666
        %v741 = vadd.f32 %v595, %v735
        %v742 = vadd.f32 %v596, %v737
        %v743 = vmul.f32 %v739, 0.5
        %v744 = vtanh.pop %v743
        %v745 = vadd.f32 %v744, 1.0
        %v746 = vmul.f32 %v745, 0.5
        %v747 = vmul.f32 %v740, 0.5
        %v748 = vtanh.pop %v747
        %v749 = vadd.f32 %v748, 1.0
        %v750 = vmul.f32 %v749, 0.5
        %v751 = vtanh.pop %v741
        %v752 = vmul.f32 %v742, 0.5
        %v753 = vtanh.pop %v752
        %v754 = vadd.f32 %v753, 1.0
        %v755 = vmul.f32 %v754, 0.5
        %v756 = vmul.f32 %v750, %v589
        %v757 = vmul.f32 %v746, %v751
        %v758 = vadd.f32 %v756, %v757
        %v759 = vtanh.pop %v758
        %v760 = vmul.f32 %v755, %v759
        %s761 = smul.u32 1, 4
        %s762 = smul.addr %s761, 8
        %s763 = scalar_lea.vmem [#allocation4], %s762
        %v764 = vld [vmem:[%s763] sm:$0xff]
        %v765 = vld [vmem:[%s763 + $0x8] sm:$0xff]
        %v766 = vld [vmem:[%s763 + $0x10] sm:$0xff]
        %v767 = vld [vmem:[%s763 + $0x18] sm:$0xff]
        %768 = vmatprep.subr.mxu0 %v585
        %769 = vmatpush1.msra.mxu0 %v584
        %770 = vmatprep.subr.mxu0 %v581
        %771 = vmatpush1.msra.mxu0 %v580
        %772 = vmatprep.subr.mxu0 %v577
        %773 = vmatpush1.msra.mxu0 %v576
        %774 = vmatprep.subr.mxu0 %v573
        %775 = vmatpush1.msra.mxu0 %v572
        %776 = vmatprep.subr.mxu0 %v569
        %777 = vmatpush1.msra.mxu0 %v568
        %778 = vmatprep.subr.mxu0 %v565
        %779 = vmatpush1.msra.mxu0 %v564
        %780 = vmatprep.subr.mxu0 %v561
        %781 = vmatpush1.msra.mxu0 %v560
        %782 = vmatprep.subr.mxu0 %v557
        %783 = vmatpush1.msra.mxu0 %v556
        %784 = vmatprep.subr.mxu0 %v553
        %785 = vmatpush1.msra.mxu0 %v552
        %786 = vmatprep.subr.mxu0 %v549
        %787 = vmatpush1.msra.mxu0 %v548
        %788 = vmatprep.subr.mxu0 %v545
        %789 = vmatpush1.msra.mxu0 %v544
        %790 = vmatprep.subr.mxu0 %v541
        %791 = vmatpush1.msra.mxu0 %v540
        %792 = vmatprep.subr.mxu0 %v537
        %793 = vmatpush1.msra.mxu0 %v536
        %794 = vmatprep.subr.mxu0 %v533
        %795 = vmatpush1.msra.mxu0 %v532
        %796 = vmatprep.subr.mxu0 %v529
        %797 = vmatpush1.msra.mxu0 %v528
        %798 = vmatprep.subr.mxu0 %v525
        %799 = vmatpush1.msra.mxu0 %v524
        %800 = vmatprep.subr.mxu0 0.0
        %801 = vmatpush2.msra.mxu0 0.0
        %802 = vmatprep.subr.mxu0 0.0
        %803 = vmatpush2.msra.mxu0 0.0
        %804 = vmatprep.subr.mxu0 0.0
        %805 = vmatpush2.msra.mxu0 0.0
        %806 = vmatprep.subr.mxu0 0.0
        %807 = vmatpush2.msra.mxu0 0.0
        %808 = vmatprep.subr.mxu0 0.0
        %809 = vmatpush2.msra.mxu0 0.0
        %810 = vmatprep.subr.mxu0 0.0
        %811 = vmatpush2.msra.mxu0 0.0
        %812 = vmatprep.subr.mxu0 0.0
        %813 = vmatpush2.msra.mxu0 0.0
        %814 = vmatprep.subr.mxu0 0.0
        %815 = vmatpush2.msra.mxu0 0.0
        %816 = vmatprep.subr.mxu0 0.0
        %817 = vmatpush2.msra.mxu0 0.0
        %818 = vmatprep.subr.mxu0 0.0
        %819 = vmatpush2.msra.mxu0 0.0
        %820 = vmatprep.subr.mxu0 0.0
        %821 = vmatpush2.msra.mxu0 0.0
        %822 = vmatprep.subr.mxu0 0.0
        %823 = vmatpush2.msra.mxu0 0.0
        %824 = vmatprep.subr.mxu0 0.0
        %825 = vmatpush2.msra.mxu0 0.0
        %826 = vmatprep.subr.mxu0 0.0
        %827 = vmatpush2.msra.mxu0 0.0
        %828 = vmatprep.subr.mxu0 0.0
        %829 = vmatpush2.msra.mxu0 0.0
        %830 = vmatprep.subr.mxu0 0.0
        %831 = vmatpush2.msra.mxu0 0.0
        %832 = vmatprep.mubr.f32.mxu0 0.0
        %833 = vmatmul.mubr.f32.gmra.mxu0 %v760
        %v834 = vpop.f32.mrf.mxu0
        %v835 = vadd.f32 0.0, %v834
        %v836 = vpop.f32.mrf.mxu0
        %v837 = vadd.f32 0.0, %v836
        %838 = vdwg.mxu0
        %839 = vmatprep.subr.mxu0 %v587
        %840 = vmatpush1.msra.mxu0 %v586
        %841 = vmatprep.subr.mxu0 %v583
        %842 = vmatpush1.msra.mxu0 %v582
        %843 = vmatprep.subr.mxu0 %v579
        %844 = vmatpush1.msra.mxu0 %v578
        %845 = vmatprep.subr.mxu0 %v575
        %846 = vmatpush1.msra.mxu0 %v574
        %847 = vmatprep.subr.mxu0 %v571
        %848 = vmatpush1.msra.mxu0 %v570
        %849 = vmatprep.subr.mxu0 %v567
        %850 = vmatpush1.msra.mxu0 %v566
        %851 = vmatprep.subr.mxu0 %v563
        %852 = vmatpush1.msra.mxu0 %v562
        %853 = vmatprep.subr.mxu0 %v559
        %854 = vmatpush1.msra.mxu0 %v558
        %855 = vmatprep.subr.mxu0 %v555
        %856 = vmatpush1.msra.mxu0 %v554
        %857 = vmatprep.subr.mxu0 %v551
        %858 = vmatpush1.msra.mxu0 %v550
        %859 = vmatprep.subr.mxu0 %v547
        %860 = vmatpush1.msra.mxu0 %v546
        %861 = vmatprep.subr.mxu0 %v543
        %862 = vmatpush1.msra.mxu0 %v542
        %863 = vmatprep.subr.mxu0 %v539
        %864 = vmatpush1.msra.mxu0 %v538
        %865 = vmatprep.subr.mxu0 %v535
        %866 = vmatpush1.msra.mxu0 %v534
        %867 = vmatprep.subr.mxu0 %v531
        %868 = vmatpush1.msra.mxu0 %v530
        %869 = vmatprep.subr.mxu0 %v527
        %870 = vmatpush1.msra.mxu0 %v526
        %871 = vmatprep.subr.mxu0 0.0
        %872 = vmatpush2.msra.mxu0 0.0
        %873 = vmatprep.subr.mxu0 0.0
        %874 = vmatpush2.msra.mxu0 0.0
        %875 = vmatprep.subr.mxu0 0.0
        %876 = vmatpush2.msra.mxu0 0.0
        %877 = vmatprep.subr.mxu0 0.0
        %878 = vmatpush2.msra.mxu0 0.0
        %879 = vmatprep.subr.mxu0 0.0
        %880 = vmatpush2.msra.mxu0 0.0
        %881 = vmatprep.subr.mxu0 0.0
        %882 = vmatpush2.msra.mxu0 0.0
        %883 = vmatprep.subr.mxu0 0.0
        %884 = vmatpush2.msra.mxu0 0.0
        %885 = vmatprep.subr.mxu0 0.0
        %886 = vmatpush2.msra.mxu0 0.0
        %887 = vmatprep.subr.mxu0 0.0
        %888 = vmatpush2.msra.mxu0 0.0
        %889 = vmatprep.subr.mxu0 0.0
        %890 = vmatpush2.msra.mxu0 0.0
        %891 = vmatprep.subr.mxu0 0.0
        %892 = vmatpush2.msra.mxu0 0.0
        %893 = vmatprep.subr.mxu0 0.0
        %894 = vmatpush2.msra.mxu0 0.0
        %895 = vmatprep.subr.mxu0 0.0
        %896 = vmatpush2.msra.mxu0 0.0
        %897 = vmatprep.subr.mxu0 0.0
        %898 = vmatpush2.msra.mxu0 0.0
        %899 = vmatprep.subr.mxu0 0.0
        %900 = vmatpush2.msra.mxu0 0.0
        %901 = vmatprep.subr.mxu0 0.0
        %902 = vmatpush2.msra.mxu0 0.0
        %903 = vmatprep.mubr.f32.mxu0 0.0
        %904 = vmatmul.mubr.f32.gmra.mxu0 %v760
        %v905 = vpop.f32.mrf.mxu0
        %v906 = vadd.f32 0.0, %v905
        %v907 = vpop.f32.mrf.mxu0
        %v908 = vadd.f32 0.0, %v907
        %909 = vdwg.mxu0
        %v910 = vadd.f32 %v764, %v835
        %v911 = vadd.f32 %v765, %v837
        %v912 = vadd.f32 %v766, %v906
        %v913 = vadd.f32 %v767, %v908
        %v914 = vmul.f32 %v910, 0.5
        %v915 = vtanh.pop %v914
        %v916 = vadd.f32 %v915, 1.0
        %v917 = vmul.f32 %v916, 0.5
        %v918 = vmul.f32 %v911, 0.5
        %v919 = vtanh.pop %v918
        %v920 = vadd.f32 %v919, 1.0
        %v921 = vmul.f32 %v920, 0.5
        %v922 = vtanh.pop %v912
        %v923 = vmul.f32 %v913, 0.5
        %v924 = vtanh.pop %v923
        %v925 = vadd.f32 %v924, 1.0
        %v926 = vmul.f32 %v925, 0.5
        %v927 = vmul.f32 %v921, %v758
        %v928 = vmul.f32 %v917, %v922
        %v929 = vadd.f32 %v927, %v928
        %v930 = vtanh.pop %v929
        %v931 = vmul.f32 %v926, %v930
        %s932 = smul.u32 2, 4
        %s933 = smul.addr %s932, 8
        %s934 = scalar_lea.vmem [#allocation4], %s933
        %v935 = vld [vmem:[%s934] sm:$0xff]
        %v936 = vld [vmem:[%s934 + $0x8] sm:$0xff]
        %v937 = vld [vmem:[%s934 + $0x10] sm:$0xff]
        %v938 = vld [vmem:[%s934 + $0x18] sm:$0xff]
        %939 = vmatprep.subr.mxu0 %v585
        %940 = vmatpush1.msra.mxu0 %v584
        %941 = vmatprep.subr.mxu0 %v581
        %942 = vmatpush1.msra.mxu0 %v580
        %943 = vmatprep.subr.mxu0 %v577
        %944 = vmatpush1.msra.mxu0 %v576
        %945 = vmatprep.subr.mxu0 %v573
        %946 = vmatpush1.msra.mxu0 %v572
        %947 = vmatprep.subr.mxu0 %v569
        %948 = vmatpush1.msra.mxu0 %v568
        %949 = vmatprep.subr.mxu0 %v565
        %950 = vmatpush1.msra.mxu0 %v564
        %951 = vmatprep.subr.mxu0 %v561
        %952 = vmatpush1.msra.mxu0 %v560
        %953 = vmatprep.subr.mxu0 %v557
        %954 = vmatpush1.msra.mxu0 %v556
        %955 = vmatprep.subr.mxu0 %v553
        %956 = vmatpush1.msra.mxu0 %v552
        %957 = vmatprep.subr.mxu0 %v549
        %958 = vmatpush1.msra.mxu0 %v548
        %959 = vmatprep.subr.mxu0 %v545
        %960 = vmatpush1.msra.mxu0 %v544
        %961 = vmatprep.subr.mxu0 %v541
        %962 = vmatpush1.msra.mxu0 %v540
        %963 = vmatprep.subr.mxu0 %v537
        %964 = vmatpush1.msra.mxu0 %v536
        %965 = vmatprep.subr.mxu0 %v533
        %966 = vmatpush1.msra.mxu0 %v532
        %967 = vmatprep.subr.mxu0 %v529
        %968 = vmatpush1.msra.mxu0 %v528
        %969 = vmatprep.subr.mxu0 %v525
        %970 = vmatpush1.msra.mxu0 %v524
        %971 = vmatprep.subr.mxu0 0.0
        %972 = vmatpush2.msra.mxu0 0.0
        %973 = vmatprep.subr.mxu0 0.0
        %974 = vmatpush2.msra.mxu0 0.0
        %975 = vmatprep.subr.mxu0 0.0
        %976 = vmatpush2.msra.mxu0 0.0
        %977 = vmatprep.subr.mxu0 0.0
        %978 = vmatpush2.msra.mxu0 0.0
        %979 = vmatprep.subr.mxu0 0.0
        %980 = vmatpush2.msra.mxu0 0.0
        %981 = vmatprep.subr.mxu0 0.0
        %982 = vmatpush2.msra.mxu0 0.0
        %983 = vmatprep.subr.mxu0 0.0
        %984 = vmatpush2.msra.mxu0 0.0
        %985 = vmatprep.subr.mxu0 0.0
        %986 = vmatpush2.msra.mxu0 0.0
        %987 = vmatprep.subr.mxu0 0.0
        %988 = vmatpush2.msra.mxu0 0.0
        %989 = vmatprep.subr.mxu0 0.0
        %990 = vmatpush2.msra.mxu0 0.0
        %991 = vmatprep.subr.mxu0 0.0
        %992 = vmatpush2.msra.mxu0 0.0
        %993 = vmatprep.subr.mxu0 0.0
        %994 = vmatpush2.msra.mxu0 0.0
        %995 = vmatprep.subr.mxu0 0.0
        %996 = vmatpush2.msra.mxu0 0.0
        %997 = vmatprep.subr.mxu0 0.0
        %998 = vmatpush2.msra.mxu0 0.0
        %999 = vmatprep.subr.mxu0 0.0
        %1000 = vmatpush2.msra.mxu0 0.0
        %1001 = vmatprep.subr.mxu0 0.0
        %1002 = vmatpush2.msra.mxu0 0.0
        %1003 = vmatprep.mubr.f32.mxu0 0.0
        %1004 = vmatmul.mubr.f32.gmra.mxu0 %v931
        %v1005 = vpop.f32.mrf.mxu0
        %v1006 = vadd.f32 0.0, %v1005
        %v1007 = vpop.f32.mrf.mxu0
        %v1008 = vadd.f32 0.0, %v1007
        %1009 = vdwg.mxu0
        %1010 = vmatprep.subr.mxu0 %v587
        %1011 = vmatpush1.msra.mxu0 %v586
        %1012 = vmatprep.subr.mxu0 %v583
        %1013 = vmatpush1.msra.mxu0 %v582
        %1014 = vmatprep.subr.mxu0 %v579
        %1015 = vmatpush1.msra.mxu0 %v578
        %1016 = vmatprep.subr.mxu0 %v575
        %1017 = vmatpush1.msra.mxu0 %v574
        %1018 = vmatprep.subr.mxu0 %v571
        %1019 = vmatpush1.msra.mxu0 %v570
        %1020 = vmatprep.subr.mxu0 %v567
        %1021 = vmatpush1.msra.mxu0 %v566
        %1022 = vmatprep.subr.mxu0 %v563
        %1023 = vmatpush1.msra.mxu0 %v562
        %1024 = vmatprep.subr.mxu0 %v559
        %1025 = vmatpush1.msra.mxu0 %v558
        %1026 = vmatprep.subr.mxu0 %v555
        %1027 = vmatpush1.msra.mxu0 %v554
        %1028 = vmatprep.subr.mxu0 %v551
        %1029 = vmatpush1.msra.mxu0 %v550
        %1030 = vmatprep.subr.mxu0 %v547
        %1031 = vmatpush1.msra.mxu0 %v546
        %1032 = vmatprep.subr.mxu0 %v543
        %1033 = vmatpush1.msra.mxu0 %v542
        %1034 = vmatprep.subr.mxu0 %v539
        %1035 = vmatpush1.msra.mxu0 %v538
        %1036 = vmatprep.subr.mxu0 %v535
        %1037 = vmatpush1.msra.mxu0 %v534
        %1038 = vmatprep.subr.mxu0 %v531
        %1039 = vmatpush1.msra.mxu0 %v530
        %1040 = vmatprep.subr.mxu0 %v527
        %1041 = vmatpush1.msra.mxu0 %v526
        %1042 = vmatprep.subr.mxu0 0.0
        %1043 = vmatpush2.msra.mxu0 0.0
        %1044 = vmatprep.subr.mxu0 0.0
        %1045 = vmatpush2.msra.mxu0 0.0
        %1046 = vmatprep.subr.mxu0 0.0
        %1047 = vmatpush2.msra.mxu0 0.0
        %1048 = vmatprep.subr.mxu0 0.0
        %1049 = vmatpush2.msra.mxu0 0.0
        %1050 = vmatprep.subr.mxu0 0.0
        %1051 = vmatpush2.msra.mxu0 0.0
        %1052 = vmatprep.subr.mxu0 0.0
        %1053 = vmatpush2.msra.mxu0 0.0
        %1054 = vmatprep.subr.mxu0 0.0
        %1055 = vmatpush2.msra.mxu0 0.0
        %1056 = vmatprep.subr.mxu0 0.0
        %1057 = vmatpush2.msra.mxu0 0.0
        %1058 = vmatprep.subr.mxu0 0.0
        %1059 = vmatpush2.msra.mxu0 0.0
        %1060 = vmatprep.subr.mxu0 0.0
        %1061 = vmatpush2.msra.mxu0 0.0
        %1062 = vmatprep.subr.mxu0 0.0
        %1063 = vmatpush2.msra.mxu0 0.0
        %1064 = vmatprep.subr.mxu0 0.0
        %1065 = vmatpush2.msra.mxu0 0.0
        %1066 = vmatprep.subr.mxu0 0.0
        %1067 = vmatpush2.msra.mxu0 0.0
        %1068 = vmatprep.subr.mxu0 0.0
        %1069 = vmatpush2.msra.mxu0 0.0
        %1070 = vmatprep.subr.mxu0 0.0
        %1071 = vmatpush2.msra.mxu0 0.0
        %1072 = vmatprep.subr.mxu0 0.0
        %1073 = vmatpush2.msra.mxu0 0.0
        %1074 = vmatprep.mubr.f32.mxu0 0.0
        %1075 = vmatmul.mubr.f32.gmra.mxu0 %v931
        %v1076 = vpop.f32.mrf.mxu0
        %v1077 = vadd.f32 0.0, %v1076
        %v1078 = vpop.f32.mrf.mxu0
        %v1079 = vadd.f32 0.0, %v1078
        %1080 = vdwg.mxu0
        %v1081 = vadd.f32 %v935, %v1006
        %v1082 = vadd.f32 %v936, %v1008
        %v1083 = vadd.f32 %v937, %v1077
        %v1084 = vadd.f32 %v938, %v1079
        %v1085 = vmul.f32 %v1081, 0.5
        %v1086 = vtanh.pop %v1085
        %v1087 = vadd.f32 %v1086, 1.0
        %v1088 = vmul.f32 %v1087, 0.5
        %v1089 = vmul.f32 %v1082, 0.5
        %v1090 = vtanh.pop %v1089
        %v1091 = vadd.f32 %v1090, 1.0
        %v1092 = vmul.f32 %v1091, 0.5
        %v1093 = vtanh.pop %v1083
        %v1094 = vmul.f32 %v1084, 0.5
        %v1095 = vtanh.pop %v1094
        %v1096 = vadd.f32 %v1095, 1.0
        %v1097 = vmul.f32 %v1096, 0.5
        %v1098 = vmul.f32 %v1092, %v929
        %v1099 = vmul.f32 %v1088, %v1093
        %v1100 = vadd.f32 %v1098, %v1099
        %v1101 = vtanh.pop %v1100
        %v1102 = vmul.f32 %v1097, %v1101
        %s1103 = smul.u32 3, 4
        %s1104 = smul.addr %s1103, 8
        %s1105 = scalar_lea.vmem [#allocation4], %s1104
        %v1106 = vld [vmem:[%s1105] sm:$0xff]
        %v1107 = vld [vmem:[%s1105 + $0x8] sm:$0xff]
        %v1108 = vld [vmem:[%s1105 + $0x10] sm:$0xff]
        %v1109 = vld [vmem:[%s1105 + $0x18] sm:$0xff]
        %1110 = vmatprep.subr.mxu0 %v585
        %1111 = vmatpush1.msra.mxu0 %v584
        %1112 = vmatprep.subr.mxu0 %v581
        %1113 = vmatpush1.msra.mxu0 %v580
        %1114 = vmatprep.subr.mxu0 %v577
        %1115 = vmatpush1.msra.mxu0 %v576
        %1116 = vmatprep.subr.mxu0 %v573
        %1117 = vmatpush1.msra.mxu0 %v572
        %1118 = vmatprep.subr.mxu0 %v569
        %1119 = vmatpush1.msra.mxu0 %v568
        %1120 = vmatprep.subr.mxu0 %v565
        %1121 = vmatpush1.msra.mxu0 %v564
        %1122 = vmatprep.subr.mxu0 %v561
        %1123 = vmatpush1.msra.mxu0 %v560
        %1124 = vmatprep.subr.mxu0 %v557
        %1125 = vmatpush1.msra.mxu0 %v556
        %1126 = vmatprep.subr.mxu0 %v553
        %1127 = vmatpush1.msra.mxu0 %v552
        %1128 = vmatprep.subr.mxu0 %v549
        %1129 = vmatpush1.msra.mxu0 %v548
        %1130 = vmatprep.subr.mxu0 %v545
        %1131 = vmatpush1.msra.mxu0 %v544
        %1132 = vmatprep.subr.mxu0 %v541
        %1133 = vmatpush1.msra.mxu0 %v540
        %1134 = vmatprep.subr.mxu0 %v537
        %1135 = vmatpush1.msra.mxu0 %v536
        %1136 = vmatprep.subr.mxu0 %v533
        %1137 = vmatpush1.msra.mxu0 %v532
        %1138 = vmatprep.subr.mxu0 %v529
        %1139 = vmatpush1.msra.mxu0 %v528
        %1140 = vmatprep.subr.mxu0 %v525
        %1141 = vmatpush1.msra.mxu0 %v524
        %1142 = vmatprep.subr.mxu0 0.0
        %1143 = vmatpush2.msra.mxu0 0.0
        %1144 = vmatprep.subr.mxu0 0.0
        %1145 = vmatpush2.msra.mxu0 0.0
        %1146 = vmatprep.subr.mxu0 0.0
        %1147 = vmatpush2.msra.mxu0 0.0
        %1148 = vmatprep.subr.mxu0 0.0
        %1149 = vmatpush2.msra.mxu0 0.0
        %1150 = vmatprep.subr.mxu0 0.0
        %1151 = vmatpush2.msra.mxu0 0.0
        %1152 = vmatprep.subr.mxu0 0.0
        %1153 = vmatpush2.msra.mxu0 0.0
        %1154 = vmatprep.subr.mxu0 0.0
        %1155 = vmatpush2.msra.mxu0 0.0
        %1156 = vmatprep.subr.mxu0 0.0
        %1157 = vmatpush2.msra.mxu0 0.0
        %1158 = vmatprep.subr.mxu0 0.0
        %1159 = vmatpush2.msra.mxu0 0.0
        %1160 = vmatprep.subr.mxu0 0.0
        %1161 = vmatpush2.msra.mxu0 0.0
        %1162 = vmatprep.subr.mxu0 0.0
        %1163 = vmatpush2.msra.mxu0 0.0
        %1164 = vmatprep.subr.mxu0 0.0
        %1165 = vmatpush2.msra.mxu0 0.0
        %1166 = vmatprep.subr.mxu0 0.0
        %1167 = vmatpush2.msra.mxu0 0.0
        %1168 = vmatprep.subr.mxu0 0.0
        %1169 = vmatpush2.msra.mxu0 0.0
        %1170 = vmatprep.subr.mxu0 0.0
        %1171 = vmatpush2.msra.mxu0 0.0
        %1172 = vmatprep.subr.mxu0 0.0
        %1173 = vmatpush2.msra.mxu0 0.0
        %1174 = vmatprep.mubr.f32.mxu0 0.0
        %1175 = vmatmul.mubr.f32.gmra.mxu0 %v1102
        %v1176 = vpop.f32.mrf.mxu0
        %v1177 = vadd.f32 0.0, %v1176
        %v1178 = vpop.f32.mrf.mxu0
        %v1179 = vadd.f32 0.0, %v1178
        %1180 = vdwg.mxu0
        %1181 = vmatprep.subr.mxu0 %v587
        %1182 = vmatpush1.msra.mxu0 %v586
        %1183 = vmatprep.subr.mxu0 %v583
        %1184 = vmatpush1.msra.mxu0 %v582
        %1185 = vmatprep.subr.mxu0 %v579
        %1186 = vmatpush1.msra.mxu0 %v578
        %1187 = vmatprep.subr.mxu0 %v575
        %1188 = vmatpush1.msra.mxu0 %v574
        %1189 = vmatprep.subr.mxu0 %v571
        %1190 = vmatpush1.msra.mxu0 %v570
        %1191 = vmatprep.subr.mxu0 %v567
        %1192 = vmatpush1.msra.mxu0 %v566
        %1193 = vmatprep.subr.mxu0 %v563
        %1194 = vmatpush1.msra.mxu0 %v562
        %1195 = vmatprep.subr.mxu0 %v559
        %1196 = vmatpush1.msra.mxu0 %v558
        %1197 = vmatprep.subr.mxu0 %v555
        %1198 = vmatpush1.msra.mxu0 %v554
        %1199 = vmatprep.subr.mxu0 %v551
        %1200 = vmatpush1.msra.mxu0 %v550
        %1201 = vmatprep.subr.mxu0 %v547
        %1202 = vmatpush1.msra.mxu0 %v546
        %1203 = vmatprep.subr.mxu0 %v543
        %1204 = vmatpush1.msra.mxu0 %v542
        %1205 = vmatprep.subr.mxu0 %v539
        %1206 = vmatpush1.msra.mxu0 %v538
        %1207 = vmatprep.subr.mxu0 %v535
        %1208 = vmatpush1.msra.mxu0 %v534
        %1209 = vmatprep.subr.mxu0 %v531
        %1210 = vmatpush1.msra.mxu0 %v530
        %1211 = vmatprep.subr.mxu0 %v527
        %1212 = vmatpush1.msra.mxu0 %v526
        %1213 = vmatprep.subr.mxu0 0.0
        %1214 = vmatpush2.msra.mxu0 0.0
        %1215 = vmatprep.subr.mxu0 0.0
        %1216 = vmatpush2.msra.mxu0 0.0
        %1217 = vmatprep.subr.mxu0 0.0
        %1218 = vmatpush2.msra.mxu0 0.0
        %1219 = vmatprep.subr.mxu0 0.0
        %1220 = vmatpush2.msra.mxu0 0.0
        %1221 = vmatprep.subr.mxu0 0.0
        %1222 = vmatpush2.msra.mxu0 0.0
        %1223 = vmatprep.subr.mxu0 0.0
        %1224 = vmatpush2.msra.mxu0 0.0
        %1225 = vmatprep.subr.mxu0 0.0
        %1226 = vmatpush2.msra.mxu0 0.0
        %1227 = vmatprep.subr.mxu0 0.0
        %1228 = vmatpush2.msra.mxu0 0.0
        %1229 = vmatprep.subr.mxu0 0.0
        %1230 = vmatpush2.msra.mxu0 0.0
        %1231 = vmatprep.subr.mxu0 0.0
        %1232 = vmatpush2.msra.mxu0 0.0
        %1233 = vmatprep.subr.mxu0 0.0
        %1234 = vmatpush2.msra.mxu0 0.0
        %1235 = vmatprep.subr.mxu0 0.0
        %1236 = vmatpush2.msra.mxu0 0.0
        %1237 = vmatprep.subr.mxu0 0.0
        %1238 = vmatpush2.msra.mxu0 0.0
        %1239 = vmatprep.subr.mxu0 0.0
        %1240 = vmatpush2.msra.mxu0 0.0
        %1241 = vmatprep.subr.mxu0 0.0
        %1242 = vmatpush2.msra.mxu0 0.0
        %1243 = vmatprep.subr.mxu0 0.0
        %1244 = vmatpush2.msra.mxu0 0.0
        %1245 = vmatprep.mubr.f32.mxu0 0.0
        %1246 = vmatmul.mubr.f32.gmra.mxu0 %v1102
        %v1247 = vpop.f32.mrf.mxu0
        %v1248 = vadd.f32 0.0, %v1247
        %v1249 = vpop.f32.mrf.mxu0
        %v1250 = vadd.f32 0.0, %v1249
        %1251 = vdwg.mxu0
        %v1252 = vadd.f32 %v1106, %v1177
        %v1253 = vadd.f32 %v1107, %v1179
        %v1254 = vadd.f32 %v1108, %v1248
        %v1255 = vadd.f32 %v1109, %v1250
        %v1256 = vmul.f32 %v1252, 0.5
        %v1257 = vtanh.pop %v1256
        %v1258 = vadd.f32 %v1257, 1.0
        %v1259 = vmul.f32 %v1258, 0.5
        %v1260 = vmul.f32 %v1253, 0.5
        %v1261 = vtanh.pop %v1260
        %v1262 = vadd.f32 %v1261, 1.0
        %v1263 = vmul.f32 %v1262, 0.5
        %v1264 = vtanh.pop %v1254
        %v1265 = vmul.f32 %v1255, 0.5
        %v1266 = vtanh.pop %v1265
        %v1267 = vadd.f32 %v1266, 1.0
        %v1268 = vmul.f32 %v1267, 0.5
        %v1269 = vmul.f32 %v1263, %v1100
        %v1270 = vmul.f32 %v1259, %v1264
        %v1271 = vadd.f32 %v1269, %v1270
        %v1272 = vtanh.pop %v1271
        %v1273 = vmul.f32 %v1268, %v1272
        %1274 = vst [vmem:[#allocation2] sm:$0xff] %v1273
        %1275 = vst [vmem:[#allocation3] sm:$0xff] %v1271
        %p1276 = scmp.eq.s32.totalorder %s19, 1
        // Predicated region
        $region57: #{_lambda_.1} parent=43 // pred_check
          %p1277 = pneg %p1276
        $region58: #{_lambda_.1} parent=43 // pred_check_branch
          %1279 = sbr.rel (%p1277) target = $region60
        $region59: #{_lambda_.1} parent=43 // pred_region
          %v1280 = vld [vmem:[#allocation7] sm:$0xff]
          %v1281 = vld [vmem:[#allocation7 + $0x8] sm:$0xff]
          %v1282 = vld [vmem:[#allocation7 + $0x10] sm:$0xff]
          %v1283 = vld [vmem:[#allocation7 + $0x18] sm:$0xff]
          %v1284 = vld [vmem:[#allocation7 + $0x20] sm:$0xff]
          %v1285 = vld [vmem:[#allocation7 + $0x28] sm:$0xff]
          %v1286 = vld [vmem:[#allocation7 + $0x30] sm:$0xff]
          %v1287 = vld [vmem:[#allocation7 + $0x38] sm:$0xff]
          %v1288 = vld [vmem:[#allocation7 + $0x40] sm:$0xff]
          %v1289 = vld [vmem:[#allocation7 + $0x48] sm:$0xff]
          %v1290 = vld [vmem:[#allocation7 + $0x50] sm:$0xff]
          %v1291 = vld [vmem:[#allocation7 + $0x58] sm:$0xff]
          %v1292 = vld [vmem:[#allocation7 + $0x60] sm:$0xff]
          %v1293 = vld [vmem:[#allocation7 + $0x68] sm:$0xff]
          %v1294 = vld [vmem:[#allocation7 + $0x70] sm:$0xff]
          %v1295 = vld [vmem:[#allocation7 + $0x78] sm:$0xff]
          %v1296 = vld [vmem:[%s5] sm:$0x1]
          %v1298 = vlaneseq
          %v1299 = vshrl.u32 %v1298, 7
          %v1300 = vsub.s32 0, %v1299
          %v1301 = vrot.slane %v1296, %v1300
          %1303 = vmatprep.subr.mxu0 0.0
          %1304 = vmatpush1.msra.mxu0 %v1295
          %1305 = vmatprep.subr.mxu0 0.0
          %1306 = vmatpush1.msra.mxu0 %v1294
          %1307 = vmatprep.subr.mxu0 0.0
          %1308 = vmatpush1.msra.mxu0 %v1293
          %1309 = vmatprep.subr.mxu0 0.0
          %1310 = vmatpush1.msra.mxu0 %v1292
          %1311 = vmatprep.subr.mxu0 0.0
          %1312 = vmatpush1.msra.mxu0 %v1291
          %1313 = vmatprep.subr.mxu0 0.0
          %1314 = vmatpush1.msra.mxu0 %v1290
          %1315 = vmatprep.subr.mxu0 0.0
          %1316 = vmatpush1.msra.mxu0 %v1289
          %1317 = vmatprep.subr.mxu0 0.0
          %1318 = vmatpush1.msra.mxu0 %v1288
          %1319 = vmatprep.subr.mxu0 0.0
          %1320 = vmatpush1.msra.mxu0 %v1287
          %1321 = vmatprep.subr.mxu0 0.0
          %1322 = vmatpush1.msra.mxu0 %v1286
          %1323 = vmatprep.subr.mxu0 0.0
          %1324 = vmatpush1.msra.mxu0 %v1285
          %1325 = vmatprep.subr.mxu0 0.0
          %1326 = vmatpush1.msra.mxu0 %v1284
          %1327 = vmatprep.subr.mxu0 0.0
          %1328 = vmatpush1.msra.mxu0 %v1283
          %1329 = vmatprep.subr.mxu0 0.0
          %1330 = vmatpush1.msra.mxu0 %v1282
          %1331 = vmatprep.subr.mxu0 0.0
          %1332 = vmatpush1.msra.mxu0 %v1281
          %1333 = vmatprep.subr.mxu0 0.0
          %1334 = vmatpush1.msra.mxu0 %v1280
          %1335 = vmatprep.subr.mxu0 0.0
          %1336 = vmatpush2.msra.mxu0 0.0
          %1337 = vmatprep.subr.mxu0 0.0
          %1338 = vmatpush2.msra.mxu0 0.0
          %1339 = vmatprep.subr.mxu0 0.0
          %1340 = vmatpush2.msra.mxu0 0.0
          %1341 = vmatprep.subr.mxu0 0.0
          %1342 = vmatpush2.msra.mxu0 0.0
          %1343 = vmatprep.subr.mxu0 0.0
          %1344 = vmatpush2.msra.mxu0 0.0
          %1345 = vmatprep.subr.mxu0 0.0
          %1346 = vmatpush2.msra.mxu0 0.0
          %1347 = vmatprep.subr.mxu0 0.0
          %1348 = vmatpush2.msra.mxu0 0.0
          %1349 = vmatprep.subr.mxu0 0.0
          %1350 = vmatpush2.msra.mxu0 0.0
          %1351 = vmatprep.subr.mxu0 0.0
          %1352 = vmatpush2.msra.mxu0 0.0
          %1353 = vmatprep.subr.mxu0 0.0
          %1354 = vmatpush2.msra.mxu0 0.0
          %1355 = vmatprep.subr.mxu0 0.0
          %1356 = vmatpush2.msra.mxu0 0.0
          %1357 = vmatprep.subr.mxu0 0.0
          %1358 = vmatpush2.msra.mxu0 0.0
          %1359 = vmatprep.subr.mxu0 0.0
          %1360 = vmatpush2.msra.mxu0 0.0
          %1361 = vmatprep.subr.mxu0 0.0
          %1362 = vmatpush2.msra.mxu0 0.0
          %1363 = vmatprep.subr.mxu0 0.0
          %1364 = vmatpush2.msra.mxu0 0.0
          %1365 = vmatprep.subr.mxu0 0.0
          %1366 = vmatpush2.msra.mxu0 0.0
          %1367 = vmatprep.mubr.f32.mxu0 0.0
          %1368 = vmatmul.mubr.f32.gmra.mxu0 %v1273
          %v1369 = vpop.f32.mrf.mxu0
          %v1370 = vadd.f32 %v1301, %v1369
          %v1371 = vpop.f32.mrf.mxu0
          %1372 = vdwg.mxu0
          %1373 = vst [vmem:[%s6] sm:$0xff] %v1370
        $region60: #{_lambda_.1} parent=43 // pred_fallthru
          _
        // Predicated region
        $region61: #{_lambda_.1} parent=43 // pred_check
          %p1374 = pneg %p163
        $region62: #{_lambda_.1} parent=43 // pred_check_branch
          %1376 = sbr.rel (%p1374) target = $region64
        $region63: #{_lambda_.1} parent=43 // pred_region
          _
        $region64: #{_lambda_.1} parent=43 // pred_fallthru
          _
        // Predicated region
        $region65: #{_lambda_.1} parent=43 // pred_check
          %p1377 = pneg %p163
        $region66: #{_lambda_.1} parent=43 // pred_check_branch
          %1379 = sbr.rel (%p1377) target = $region68
        $region67: #{_lambda_.1} parent=43 // pred_region
          _
        $region68: #{_lambda_.1} parent=43 // pred_fallthru
          _
      $region44: #{_lambda_.1} parent=5 // pred_fallthru
        _
      %p1380 = scmp.le.s32.totalorder 2, %s14
      // Predicated region
      $region69: #{_lambda_.1} parent=5 // pred_check
        %p1381 = pneg %p1380
      $region70: #{_lambda_.1} parent=5 // pred_check_branch
        %1383 = sbr.rel (%p1381) target = $region72
      $region71: #{_lambda_.1} parent=5 // pred_region
        %s1384 = ssub.s32 %s14, 2
      $region72: #{_lambda_.1} parent=5 // pred_fallthru
        _
    $region6: #{_lambda_.1} parent=1 // loop_footer
      %s18 = sadd.s32 1, %s14
    $region7: #{_lambda_.1} parent=1 // loop_footer_branch
      %13 = sbr.rel target = $region3
    $region8: #{_lambda_.1} parent=1 // loop_exit
      _
    %1385 = vsyncpa [#allocation6], 1
    %s1386 = scalar_lea.sflag [#allocation6], 1
    %1387 = vsyncpa %s1386, 1
    %1388 = vsyncpa [#allocation8], 1

</llo_original>
